<compile_context>
chip_gen: v6e
topology: v6e:2x2x1
jax: 0.10.0
libtpu: 0.0.40
codegen_flags: <defaults>
</compile_context>

<pallas_src>
import math

import numpy as np
import jax
import jax.numpy as jnp
from jax.experimental import pallas as pl
from jax.experimental.pallas import tpu as pltpu


# ----------------------------------------------------------------------------
# Host-side operator construction (numpy, one-time)
# ----------------------------------------------------------------------------
def _bilinear_matrix_np(in_size: int, out_size: int) -> np.ndarray:
    """(out_size, in_size) matrix for 1-D bilinear resize, align_corners=True."""
    A = np.zeros((out_size, in_size), np.float32)
    if in_size == 1:
        A[:, 0] = 1.0
        return A
    for o in range(out_size):
        src = o * (in_size - 1) / (out_size - 1) if out_size > 1 else 0.0
        lo = min(int(math.floor(src)), in_size - 2)
        frac = src - lo
        A[o, lo] += 1.0 - frac
        A[o, lo + 1] += frac
    return A


def _winterp_operator_np(A_w: np.ndarray, C: int) -> np.ndarray:
    """kron(A_w^T, I_C): (W*C, W2*C).  W-interp of a row-flattened image row
    becomes a single right-multiplication (folded into conv1 below)."""
    W2, W = A_w.shape
    Bw = np.einsum('pw,cd->wcpd', A_w, np.eye(C, dtype=np.float32))
    return Bw.reshape(W * C, W2 * C)


def _banded_conv_matrices_np(wt: np.ndarray, Wsp: int) -> np.ndarray:
    """3x3 conv (padding=1) as 3 row-window operators.

    wt: (3, 3, Cin, Cout) taps (ky, kx, ci, co).
    Returns M: (3, Wsp*Cin, Wsp*Cout) with
      M[ky, w_in*Cin+ci, w_out*Cout+co] = wt[ky, w_in - w_out + 1, ci, co]
    for |w_in - w_out| <= 1, so   y[h] = sum_ky row[h + ky - 1] @ M[ky].
    The band encodes the kx shifts and the zero padding along W.
    """
    _, _, Cin, Cout = wt.shape
    M = np.zeros((3, Wsp, Cin, Wsp, Cout), np.float32)
    for ky in range(3):
        for kx in range(3):
            for w_out in range(Wsp):
                w_in = w_out + kx - 1
                if 0 <= w_in < Wsp:
                    M[ky, w_in, :, w_out, :] = wt[ky, kx]
    return M.reshape(3, Wsp * Cin, Wsp * Cout)


def _row_shift_operators_np(n_images: int, H2: int) -> np.ndarray:
    """(2, R, R) 0/1 matrices with R = n_images*H2.
    S[0] @ u -> previous row (zero at each image's first row, i.e. the conv
    H halo and the image boundary for batched blocks); S[1] @ u -> next row
    (zero at each image's last row)."""
    R = n_images * H2
    r = np.arange(R)
    S = np.zeros((2, R, R), np.float32)
    top = r[r % H2 != 0]
    bot = r[r % H2 != H2 - 1]
    S[0, top, top - 1] = 1.0
    S[1, bot, bot + 1] = 1.0
    return S


def _choose_images_per_block(n_images: int, lane_cols: int) -> int:
    """Smallest divisor of n_images whose output block is lane-dense
    (multiple of 128 lanes) while keeping >= 2 grid steps when possible
    (v7x has two TensorCores)."""
    divisors = [d for d in range(1, n_images + 1) if n_images % d == 0]
    for d in divisors:
        if (d * lane_cols) % 128 == 0 and n_images // d >= 2:
            return d
    for d in divisors:
        if (d * lane_cols) % 128 == 0:
            return d
    return 1


# ----------------------------------------------------------------------------
# Fused Pallas kernel: bilinear x2 upsample + (conv3x3 + BN + ReLU) x 2
# ----------------------------------------------------------------------------
def _make_fused_kernel(compute_dtype, images_per_block, H2, out_cols):
    cdt = compute_dtype
    f32 = jnp.float32

    def kernel(x_ref, ahb_ref, sh_ref, m1_ref, b1_ref, m2_ref, b2_ref, o_ref):
        # x_ref  : (Nb*H, W*Cin)          Nb row-stacked, row-flattened NHWC images
        # ahb    : (Nb*H2, Nb*H)          block-diagonal H-interp (align_corners)
        # sh     : (2, R, R), R=Nb*H2     prev/next row selectors w/ halo zeros
        # m1     : (3, W*Cin,  W2*Cmid)   banded conv1 ops (Bw + BN scale folded)
        # m2     : (3, W2*Cmid, W2*Cout)  banded conv2 ops (BN scale folded)
        # b1/b2  : (1, W2*C)              folded BN bias, tiled over W2
        # o_ref  : (H2, Nb*W2*Cout)       lane-dense output slab (images on lanes)

        # ---- bilinear H-interp for all Nb images: one MXU matmul ------------
        x = x_ref[...].astype(cdt)                                   # (Nb*H, W*Cin)
        uh = jnp.dot(ahb_ref[...], x, preferred_element_type=f32)    # (R, W*Cin)

        s_prev = sh_ref[0]                                            # (R, R)
        s_next = sh_ref[1]

        # ---- 3x3 conv (pad=1) + folded BN + ReLU as 3 banded matmuls --------
        # operand for tap ky is row[h + ky - 1]; the shifted operands are built
        # in registers (shift-select matmul -> exact copy/zero rows), so there
        # is no pad scratch, no buffer zeroing, no unaligned sublane reloads.
        def conv_bn_relu(u_f32, m_ref, b_ref):
            u = u_f32.astype(cdt)
            prev_rows = jnp.dot(s_prev, u, preferred_element_type=f32).astype(cdt)
            next_rows = jnp.dot(s_next, u, preferred_element_type=f32).astype(cdt)
            acc = jnp.dot(prev_rows, m_ref[0], preferred_element_type=f32)
            acc = acc + jnp.dot(u, m_ref[1], preferred_element_type=f32)
            acc = acc + jnp.dot(next_rows, m_ref[2], preferred_element_type=f32)
            return jnp.maximum(acc + b_ref[...], 0.0)

        y1 = conv_bn_relu(uh, m1_ref, b1_ref)                         # (R, W2*Cmid)
        y2 = conv_bn_relu(y1, m2_ref, b2_ref)                         # (R, W2*Cout)

        # ---- lane-dense store: image i -> lanes [i*W2*Cout, (i+1)*W2*Cout) --
        for i in range(images_per_block):                             # static unroll
            o_ref[:, i * out_cols:(i + 1) * out_cols] = (
                y2[i * H2:(i + 1) * H2].astype(o_ref.dtype))

    return kernel


def _fused_upsample_doubleconv(x2d, ahb, shifts, m1s, b1t, m2s, b2t, *,
                               images_per_block, H, H2, out_cols,
                               compute_dtype, out_dtype):
    rows_total, WC = x2d.shape
    rows_per_block = images_per_block * H
    assert rows_total % rows_per_block == 0
    assert rows_per_block % 8 == 0 and H2 % 8 == 0, \
        "row-block sizes must be sublane (8) aligned"
    n_blocks = rows_total // rows_per_block
    lane_cols = images_per_block * out_cols

    kernel = _make_fused_kernel(compute_dtype, images_per_block, H2, out_cols)
    return pl.pallas_call(
        kernel,
        out_shape=jax.ShapeDtypeStruct((n_blocks * H2, lane_cols), out_dtype),
        grid_spec=pltpu.PrefetchScalarGridSpec(
            num_scalar_prefetch=0,
            grid=(n_blocks,),
            in_specs=[
                pl.BlockSpec((rows_per_block, WC), lambda g: (g, 0)),
                pl.BlockSpec(ahb.shape, lambda g: (0, 0)),
                pl.BlockSpec(shifts.shape, lambda g: (0, 0, 0)),
                pl.BlockSpec(m1s.shape, lambda g: (0, 0, 0)),
                pl.BlockSpec(b1t.shape, lambda g: (0, 0)),
                pl.BlockSpec(m2s.shape, lambda g: (0, 0, 0)),
                pl.BlockSpec(b2t.shape, lambda g: (0, 0)),
            ],
            out_specs=pl.BlockSpec((H2, lane_cols), lambda g: (g, 0)),
        ),
        compiler_params=pltpu.CompilerParams(
            dimension_semantics=("parallel",)),
    )(x2d, ahb, shifts, m1s, b1t, m2s, b2t)


# ----------------------------------------------------------------------------
# Module forward: UpSampling(bilinear=True)
# ----------------------------------------------------------------------------
def upsampling_forward(params, x_nchw, compute_dtype=jnp.bfloat16):
    N, Cin, H, W = x_nchw.shape
    assert H == params["H"] and W == params["W"] and Cin == params["in_channels"], \
        "params were prepared for a different input shape"
    Nb = params["images_per_block"]
    assert N % Nb == 0, "batch must be divisible by images_per_block"
    H2, W2 = 2 * H, 2 * W
    Cout = params["out_channels"]
    out_cols = W2 * Cout

    # NCHW -> row-flattened NHWC, Nb images stacked along rows per grid block.
    x2d = jnp.transpose(x_nchw, (0, 2, 3, 1)).reshape(N * H, W * Cin)

    op = lambda a: a.astype(compute_dtype)
    y2d = _fused_upsample_doubleconv(
        x2d,
        op(params["ahb"]), op(params["shifts"]),
        op(params["m1s"]), params["b1t"],
        op(params["m2s"]), params["b2t"],
        images_per_block=Nb, H=H, H2=H2, out_cols=out_cols,
        compute_dtype=compute_dtype, out_dtype=x_nchw.dtype)

    # (G*H2, Nb*W2*Cout) -> (N, Cout, H2, W2)   (free wrapper layout plumbing)
    G = N // Nb
    y = y2d.reshape(G, H2, Nb, W2, Cout)
    y = jnp.transpose(y, (0, 2, 1, 3, 4)).reshape(N, H2, W2, Cout)
    return jnp.transpose(y, (0, 3, 1, 2))


# ----------------------------------------------------------------------------
# Parameter construction (random weights + folded BatchNorm + folded operators)
# ----------------------------------------------------------------------------
def init_params(key, in_channels, out_channels, H, W, n_images,
                images_per_block=None):
    mid = in_channels // 2
    eps = 1e-5
    k = jax.random.split(key, 10)
    w1 = jax.random.normal(k[0], (mid, in_channels, 3, 3), jnp.float32) * 0.1  # OIHW
    w2 = jax.random.normal(k[1], (out_channels, mid, 3, 3), jnp.float32) * 0.1

    def fold_bn(kg, kb, km, kv, C):
        gamma = 1.0 + 0.1 * jax.random.normal(kg, (C,), jnp.float32)
        beta = 0.1 * jax.random.normal(kb, (C,), jnp.float32)
        mean = 0.1 * jax.random.normal(km, (C,), jnp.float32)
        var = jax.random.uniform(kv, (C,), jnp.float32, minval=0.5, maxval=1.5)
        scale = gamma / jnp.sqrt(var + eps)
        bias = beta - mean * scale
        return scale, bias

    s1, b1 = fold_bn(k[2], k[3], k[4], k[5], mid)
    s2, b2 = fold_bn(k[6], k[7], k[8], k[9], out_channels)

    H2, W2 = 2 * H, 2 * W
    A_h = _bilinear_matrix_np(H, H2)                 # (H2, H)
    A_w = _bilinear_matrix_np(W, W2)                 # (W2, W)
    bw = _winterp_operator_np(A_w, in_channels)      # (W*Cin, W2*Cin)

    # OIHW -> (ky, kx, ci, co), then banded row-window operators.
    w1_t = np.transpose(np.asarray(w1), (2, 3, 1, 0))
    w2_t = np.transpose(np.asarray(w2), (2, 3, 1, 0))
    m1 = _banded_conv_matrices_np(w1_t, W2)          # (3, W2*Cin,  W2*Cmid)
    m2 = _banded_conv_matrices_np(w2_t, W2)          # (3, W2*Cmid, W2*Cout)

    # Fold the BN scale into the operators' output columns, and the W-interp
    # operator Bw into conv1 (M1' = Bw @ M1): conv1 then consumes the
    # H-interpolated rows directly with K = W*Cin.
    s1_np, s2_np = np.asarray(s1), np.asarray(s2)
    m1 = m1 * np.tile(s1_np, W2)[None, None, :]
    m2 = m2 * np.tile(s2_np, W2)[None, None, :]
    m1 = np.einsum('ij,kjl->kil', bw, m1)            # (3, W*Cin, W2*Cmid)

    # Per-grid-step image batching (amortises per-step overhead, fills MXU M,
    # and makes the output block lane-dense).
    if images_per_block is None:
        images_per_block = _choose_images_per_block(n_images, W2 * out_channels)
    Nb = images_per_block
    ahb = np.kron(np.eye(Nb, dtype=np.float32), A_h)     # (Nb*H2, Nb*H)
    shifts = _row_shift_operators_np(Nb, H2)             # (2, R, R)

    tile_bias = lambda v, C: jnp.asarray(
        np.tile(np.asarray(v), W2).reshape(1, W2 * C), jnp.float32)

    return dict(
        H=H, W=W, in_channels=in_channels, out_channels=out_channels,
        mid_channels=mid, images_per_block=Nb,
        # kernel-side operators (stored f32; cast to the compute dtype per call)
        ahb=jnp.asarray(ahb), shifts=jnp.asarray(shifts),
        m1s=jnp.asarray(m1), m2s=jnp.asarray(m2),
        b1t=tile_bias(b1, mid), b2t=tile_bias(b2, out_channels),
        # raw parameters for the pure-JAX reference path
        w1_oihw=w1, w2_oihw=w2, s1=s1, b1=b1, s2=s2, b2=b2,
        A_h=jnp.asarray(A_h), A_w=jnp.asarray(A_w),
    )


# ----------------------------------------------------------------------------
# Pure-JAX reference (mirrors the PyTorch forward, BN folded, HIGHEST precision)
# ----------------------------------------------------------------------------
def reference_forward(params, x_nchw):
    f32 = jnp.float32
    P = jax.lax.Precision.HIGHEST
    x = x_nchw.astype(f32)
    t = jnp.einsum('oh,nchw->ncow', params["A_h"], x, precision=P)
    u = jnp.einsum('pw,ncow->ncop', params["A_w"], t, precision=P)

    def cbr(z, w, s, b):
        y = jax.lax.conv_general_dilated(
            z, w, window_strides=(1, 1), padding='SAME',
            dimension_numbers=('NCHW', 'OIHW', 'NCHW'),
            precision=P, preferred_element_type=f32)
        return jnp.maximum(y * s[None, :, None, None] + b[None, :, None, None],
                           0.0)

    y = cbr(u, params["w1_oihw"], params["s1"], params["b1"])
    y = cbr(y, params["w2_oihw"], params["s2"], params["b2"])
    return y


if __name__ == "__main__":
    in_channels, out_channels = 8, 4
    N, H, W = 4, 8, 8        # -> Nb=2 images/block, grid=(2,), output block
                             #    (16, 128): lane dense AND both v7x TCs busy.
    key = jax.random.PRNGKey(0)
    kx_, kp_ = jax.random.split(key)
    x = jax.random.normal(kx_, (N, in_channels, H, W), jnp.float32)
    params = init_params(kp_, in_channels, out_channels, H, W, N)

    ref = reference_forward(params, x)

    # --- f32 compute path: algorithmic exactness check -----------------------
    y32 = jax.block_until_ready(
        upsampling_forward(params, x, compute_dtype=jnp.float32))
    assert y32.shape == (N, out_channels, 2 * H, 2 * W), y32.shape
    err32 = float(jnp.max(jnp.abs(y32 - ref)))
    assert err32 < 5e-3, f"f32 path max abs err {err32}"

    # --- bf16 compute path (the MXU-friendly configuration) ------------------
    y16 = jax.block_until_ready(
        upsampling_forward(params, x, compute_dtype=jnp.bfloat16))
    assert y16.shape == (N, out_channels, 2 * H, 2 * W), y16.shape
    err16 = float(jnp.max(jnp.abs(y16 - ref)))
    assert err16 < 1.5e-1, f"bf16 path max abs err {err16} (vs f32 reference)"

    print("KERNEL_OK")
</pallas_src>

<mosaic_0001>
module attributes {stable_mosaic.version = 11 : i64} {
  func.func @kernel(%arg0: i32, %arg1: memref<16x64xf32, #tpu.memory_space<vmem>>, %arg2: memref<32x16xf32, #tpu.memory_space<vmem>>, %arg3: memref<2x32x32xf32, #tpu.memory_space<vmem>>, %arg4: memref<3x64x64xf32, #tpu.memory_space<vmem>>, %arg5: memref<1x64xf32, #tpu.memory_space<vmem>>, %arg6: memref<3x64x64xf32, #tpu.memory_space<vmem>>, %arg7: memref<1x64xf32, #tpu.memory_space<vmem>>, %arg8: memref<16x128xf32, #tpu.memory_space<vmem>>) attributes {dimension_semantics = [#tpu.dimension_semantics<parallel>], iteration_bounds = array<i64: 2>, scalar_prefetch = 0 : i64, scratch_operands = 0 : i64, tpu.core_type = #tpu.core_type<tc>, window_params = [{transform_indices = @transform_0, window_bounds = array<i64: 16, 64>}, {pipeline_mode = #tpu.pipeline_mode<synchronous>, transform_indices = @transform_1, window_bounds = array<i64: 32, 16>}, {pipeline_mode = #tpu.pipeline_mode<synchronous>, transform_indices = @transform_2, window_bounds = array<i64: 2, 32, 32>}, {pipeline_mode = #tpu.pipeline_mode<synchronous>, transform_indices = @transform_3, window_bounds = array<i64: 3, 64, 64>}, {pipeline_mode = #tpu.pipeline_mode<synchronous>, transform_indices = @transform_4, window_bounds = array<i64: 1, 64>}, {pipeline_mode = #tpu.pipeline_mode<synchronous>, transform_indices = @transform_5, window_bounds = array<i64: 3, 64, 64>}, {pipeline_mode = #tpu.pipeline_mode<synchronous>, transform_indices = @transform_6, window_bounds = array<i64: 1, 64>}, {transform_indices = @transform_7, window_bounds = array<i64: 16, 128>}]} {
    %c0 = arith.constant 0 : index
    %c0_0 = arith.constant 0 : index
    %0 = vector.load %arg1[%c0, %c0_0] : memref<16x64xf32, #tpu.memory_space<vmem>>, vector<16x64xf32>
    %c0_1 = arith.constant 0 : index
    %c0_2 = arith.constant 0 : index
    %1 = vector.load %arg2[%c0_1, %c0_2] : memref<32x16xf32, #tpu.memory_space<vmem>>, vector<32x16xf32>
    %cst = arith.constant dense<0.000000e+00> : vector<32x64xf32>
    %2 = tpu.matmul %1, %0, %cst {dimension_numbers = #tpu.dot_dimension_numbers<[1], [0], [0], [1], [0, 0, 1, 1], [], []>} : vector<32x16xf32>, vector<16x64xf32>, vector<32x64xf32> -> vector<32x64xf32>
    %c0_3 = arith.constant 0 : index
    %c0_4 = arith.constant 0 : index
    %c0_5 = arith.constant 0 : index
    %3 = vector.load %arg3[%c0_3, %c0_4, %c0_5] : memref<2x32x32xf32, #tpu.memory_space<vmem>>, vector<1x32x32xf32>
    %4 = vector.shape_cast %3 : vector<1x32x32xf32> to vector<32x32xf32>
    %c1 = arith.constant 1 : index
    %c0_6 = arith.constant 0 : index
    %c0_7 = arith.constant 0 : index
    %5 = vector.load %arg3[%c1, %c0_6, %c0_7] : memref<2x32x32xf32, #tpu.memory_space<vmem>>, vector<1x32x32xf32>
    %6 = vector.shape_cast %5 : vector<1x32x32xf32> to vector<32x32xf32>
    %cst_8 = arith.constant dense<0.000000e+00> : vector<32x64xf32>
    %7 = tpu.matmul %4, %2, %cst_8 {dimension_numbers = #tpu.dot_dimension_numbers<[1], [0], [0], [1], [0, 0, 1, 1], [], []>} : vector<32x32xf32>, vector<32x64xf32>, vector<32x64xf32> -> vector<32x64xf32>
    %cst_9 = arith.constant dense<0.000000e+00> : vector<32x64xf32>
    %8 = tpu.matmul %6, %2, %cst_9 {dimension_numbers = #tpu.dot_dimension_numbers<[1], [0], [0], [1], [0, 0, 1, 1], [], []>} : vector<32x32xf32>, vector<32x64xf32>, vector<32x64xf32> -> vector<32x64xf32>
    %c0_10 = arith.constant 0 : index
    %c0_11 = arith.constant 0 : index
    %c0_12 = arith.constant 0 : index
    %9 = vector.load %arg4[%c0_10, %c0_11, %c0_12] : memref<3x64x64xf32, #tpu.memory_space<vmem>>, vector<1x64x64xf32>
    %10 = vector.shape_cast %9 : vector<1x64x64xf32> to vector<64x64xf32>
    %cst_13 = arith.constant dense<0.000000e+00> : vector<32x64xf32>
    %11 = tpu.matmul %7, %10, %cst_13 {dimension_numbers = #tpu.dot_dimension_numbers<[1], [0], [0], [1], [0, 0, 1, 1], [], []>} : vector<32x64xf32>, vector<64x64xf32>, vector<32x64xf32> -> vector<32x64xf32>
    %c1_14 = arith.constant 1 : index
    %c0_15 = arith.constant 0 : index
    %c0_16 = arith.constant 0 : index
    %12 = vector.load %arg4[%c1_14, %c0_15, %c0_16] : memref<3x64x64xf32, #tpu.memory_space<vmem>>, vector<1x64x64xf32>
    %13 = vector.shape_cast %12 : vector<1x64x64xf32> to vector<64x64xf32>
    %cst_17 = arith.constant dense<0.000000e+00> : vector<32x64xf32>
    %14 = tpu.matmul %2, %13, %cst_17 {dimension_numbers = #tpu.dot_dimension_numbers<[1], [0], [0], [1], [0, 0, 1, 1], [], []>} : vector<32x64xf32>, vector<64x64xf32>, vector<32x64xf32> -> vector<32x64xf32>
    %15 = arith.addf %11, %14 : vector<32x64xf32>
    %c2 = arith.constant 2 : index
    %c0_18 = arith.constant 0 : index
    %c0_19 = arith.constant 0 : index
    %16 = vector.load %arg4[%c2, %c0_18, %c0_19] : memref<3x64x64xf32, #tpu.memory_space<vmem>>, vector<1x64x64xf32>
    %17 = vector.shape_cast %16 : vector<1x64x64xf32> to vector<64x64xf32>
    %cst_20 = arith.constant dense<0.000000e+00> : vector<32x64xf32>
    %18 = tpu.matmul %8, %17, %cst_20 {dimension_numbers = #tpu.dot_dimension_numbers<[1], [0], [0], [1], [0, 0, 1, 1], [], []>} : vector<32x64xf32>, vector<64x64xf32>, vector<32x64xf32> -> vector<32x64xf32>
    %19 = arith.addf %15, %18 : vector<32x64xf32>
    %c0_21 = arith.constant 0 : index
    %c0_22 = arith.constant 0 : index
    %20 = vector.load %arg5[%c0_21, %c0_22] : memref<1x64xf32, #tpu.memory_space<vmem>>, vector<1x64xf32>
    %21 = vector.broadcast %20 : vector<1x64xf32> to vector<32x64xf32>
    %22 = arith.addf %19, %21 : vector<32x64xf32>
    %cst_23 = arith.constant 0.000000e+00 : f32
    %23 = vector.broadcast %cst_23 : f32 to vector<32x64xf32>
    %24 = arith.maximumf %22, %23 : vector<32x64xf32>
    %cst_24 = arith.constant dense<0.000000e+00> : vector<32x64xf32>
    %25 = tpu.matmul %4, %24, %cst_24 {dimension_numbers = #tpu.dot_dimension_numbers<[1], [0], [0], [1], [0, 0, 1, 1], [], []>} : vector<32x32xf32>, vector<32x64xf32>, vector<32x64xf32> -> vector<32x64xf32>
    %cst_25 = arith.constant dense<0.000000e+00> : vector<32x64xf32>
    %26 = tpu.matmul %6, %24, %cst_25 {dimension_numbers = #tpu.dot_dimension_numbers<[1], [0], [0], [1], [0, 0, 1, 1], [], []>} : vector<32x32xf32>, vector<32x64xf32>, vector<32x64xf32> -> vector<32x64xf32>
    %c0_26 = arith.constant 0 : index
    %c0_27 = arith.constant 0 : index
    %c0_28 = arith.constant 0 : index
    %27 = vector.load %arg6[%c0_26, %c0_27, %c0_28] : memref<3x64x64xf32, #tpu.memory_space<vmem>>, vector<1x64x64xf32>
    %28 = vector.shape_cast %27 : vector<1x64x64xf32> to vector<64x64xf32>
    %cst_29 = arith.constant dense<0.000000e+00> : vector<32x64xf32>
    %29 = tpu.matmul %25, %28, %cst_29 {dimension_numbers = #tpu.dot_dimension_numbers<[1], [0], [0], [1], [0, 0, 1, 1], [], []>} : vector<32x64xf32>, vector<64x64xf32>, vector<32x64xf32> -> vector<32x64xf32>
    %c1_30 = arith.constant 1 : index
    %c0_31 = arith.constant 0 : index
    %c0_32 = arith.constant 0 : index
    %30 = vector.load %arg6[%c1_30, %c0_31, %c0_32] : memref<3x64x64xf32, #tpu.memory_space<vmem>>, vector<1x64x64xf32>
    %31 = vector.shape_cast %30 : vector<1x64x64xf32> to vector<64x64xf32>
    %cst_33 = arith.constant dense<0.000000e+00> : vector<32x64xf32>
    %32 = tpu.matmul %24, %31, %cst_33 {dimension_numbers = #tpu.dot_dimension_numbers<[1], [0], [0], [1], [0, 0, 1, 1], [], []>} : vector<32x64xf32>, vector<64x64xf32>, vector<32x64xf32> -> vector<32x64xf32>
    %33 = arith.addf %29, %32 : vector<32x64xf32>
    %c2_34 = arith.constant 2 : index
    %c0_35 = arith.constant 0 : index
    %c0_36 = arith.constant 0 : index
    %34 = vector.load %arg6[%c2_34, %c0_35, %c0_36] : memref<3x64x64xf32, #tpu.memory_space<vmem>>, vector<1x64x64xf32>
    %35 = vector.shape_cast %34 : vector<1x64x64xf32> to vector<64x64xf32>
    %cst_37 = arith.constant dense<0.000000e+00> : vector<32x64xf32>
    %36 = tpu.matmul %26, %35, %cst_37 {dimension_numbers = #tpu.dot_dimension_numbers<[1], [0], [0], [1], [0, 0, 1, 1], [], []>} : vector<32x64xf32>, vector<64x64xf32>, vector<32x64xf32> -> vector<32x64xf32>
    %37 = arith.addf %33, %36 : vector<32x64xf32>
    %c0_38 = arith.constant 0 : index
    %c0_39 = arith.constant 0 : index
    %38 = vector.load %arg7[%c0_38, %c0_39] : memref<1x64xf32, #tpu.memory_space<vmem>>, vector<1x64xf32>
    %39 = vector.broadcast %38 : vector<1x64xf32> to vector<32x64xf32>
    %40 = arith.addf %37, %39 : vector<32x64xf32>
    %cst_40 = arith.constant 0.000000e+00 : f32
    %41 = vector.broadcast %cst_40 : f32 to vector<32x64xf32>
    %42 = arith.maximumf %40, %41 : vector<32x64xf32>
    %43 = vector.extract_strided_slice %42 {offsets = [0, 0], sizes = [16, 64], strides = [1, 1]} : vector<32x64xf32> to vector<16x64xf32>
    %c0_41 = arith.constant 0 : index
    %c0_42 = arith.constant 0 : index
    %44 = vector.load %arg8[%c0_41, %c0_42] : memref<16x128xf32, #tpu.memory_space<vmem>>, vector<16x64xf32>
    tpu.vector_store %arg8[%c0_41, %c0_42], %43 {strides = array<i32>} : memref<16x128xf32, #tpu.memory_space<vmem>>, vector<16x64xf32>,
    %45 = vector.extract_strided_slice %42 {offsets = [16, 0], sizes = [16, 64], strides = [1, 1]} : vector<32x64xf32> to vector<16x64xf32>
    %c0_43 = arith.constant 0 : index
    %c64 = arith.constant 64 : index
    %46 = vector.load %arg8[%c0_43, %c64] : memref<16x128xf32, #tpu.memory_space<vmem>>, vector<16x64xf32>
    tpu.vector_store %arg8[%c0_43, %c64], %45 {strides = array<i32>} : memref<16x128xf32, #tpu.memory_space<vmem>>, vector<16x64xf32>,
    return
  }
  func.func @transform_0(%arg0: i32) -> (i32, i32) {
    %c0_i32 = arith.constant 0 : i32
    %c0_i32_0 = arith.constant 0 : i32
    return %arg0, %c0_i32 : i32, i32
  }
  func.func @transform_1(%arg0: i32) -> (i32, i32) {
    %c0_i32 = arith.constant 0 : i32
    %c0_i32_0 = arith.constant 0 : i32
    %c0_i32_1 = arith.constant 0 : i32
    return %c0_i32, %c0_i32_0 : i32, i32
  }
  func.func @transform_2(%arg0: i32) -> (i32, i32, i32) {
    %c0_i32 = arith.constant 0 : i32
    %c0_i32_0 = arith.constant 0 : i32
    %c0_i32_1 = arith.constant 0 : i32
    %c0_i32_2 = arith.constant 0 : i32
    return %c0_i32, %c0_i32_0, %c0_i32_1 : i32, i32, i32
  }
  func.func @transform_3(%arg0: i32) -> (i32, i32, i32) {
    %c0_i32 = arith.constant 0 : i32
    %c0_i32_0 = arith.constant 0 : i32
    %c0_i32_1 = arith.constant 0 : i32
    %c0_i32_2 = arith.constant 0 : i32
    return %c0_i32, %c0_i32_0, %c0_i32_1 : i32, i32, i32
  }
  func.func @transform_4(%arg0: i32) -> (i32, i32) {
    %c0_i32 = arith.constant 0 : i32
    %c0_i32_0 = arith.constant 0 : i32
    %c0_i32_1 = arith.constant 0 : i32
    return %c0_i32, %c0_i32_0 : i32, i32
  }
  func.func @transform_5(%arg0: i32) -> (i32, i32, i32) {
    %c0_i32 = arith.constant 0 : i32
    %c0_i32_0 = arith.constant 0 : i32
    %c0_i32_1 = arith.constant 0 : i32
    %c0_i32_2 = arith.constant 0 : i32
    return %c0_i32, %c0_i32_0, %c0_i32_1 : i32, i32, i32
  }
  func.func @transform_6(%arg0: i32) -> (i32, i32) {
    %c0_i32 = arith.constant 0 : i32
    %c0_i32_0 = arith.constant 0 : i32
    %c0_i32_1 = arith.constant 0 : i32
    return %c0_i32, %c0_i32_0 : i32, i32
  }
  func.func @transform_7(%arg0: i32) -> (i32, i32) {
    %c0_i32 = arith.constant 0 : i32
    %c0_i32_0 = arith.constant 0 : i32
    return %arg0, %c0_i32 : i32, i32
  }
}

</mosaic_0001>

<llo_original>
// kernel: tpu_custom_call.1
$region0: #{tpu_custom_call.1}
  #allocation0 [shape = 'u32[]', space=smem, size = 0x4, offset = 0x4, fixed_abs, tag = 'smem constant byte address 0x4 - core index']
  #allocation1 [shape = 'u32[144,128]{1,0:T(1,128)}', space=vmem, size = 0x12000, scoped, tag = 'internal scratch']
  %s0 = inlined_call_operand.vmem [shape: f32[32,64], index: 0, kind: input, shape index: {}]
  %s1 = inlined_call_operand.vmem [shape: f32[32,16], index: 1, kind: input, shape index: {}]
  %s2 = inlined_call_operand.hbm [shape: f32[2,32,32], index: 2, kind: input, shape index: {}]
  %s3 = inlined_call_operand.hbm [shape: f32[3,64,64], index: 3, kind: input, shape index: {}]
  %s4 = inlined_call_operand.vmem [shape: f32[1,64], index: 4, kind: input, shape index: {}]
  %s5 = inlined_call_operand.hbm [shape: f32[3,64,64], index: 5, kind: input, shape index: {}]
  %s6 = inlined_call_operand.vmem [shape: f32[1,64], index: 6, kind: input, shape index: {}]
  %s7 = inlined_call_operand.hbm [shape: f32[32,128], index: 7, kind: output, shape index: {}]
  %s8 = sld [smem:[#allocation0]]
  $region73: #{tpu_custom_call.1} parent=0
    _
  %s10 = ssub.s32 1, %s8
  %s11 = scalar_select 0, %s10, %s8
  $region1: #{tpu_custom_call.1} parent=0
    #allocation2 [shape = 'u8[32768]{0}', space=vmem, size = 0x8000, scoped, tag = 'input window, operand 2, single buffered']
    #allocation3 [shape = 's32[2]{0}', space=sflag, size = 0x8, scoped, tag = 'scoped memory for tpu_custom_call.1']
    #allocation4 [shape = 's32[2]{0}', space=sflag, size = 0x8, scoped, tag = 'scoped memory for tpu_custom_call.1']
    #allocation5 [shape = 'u8[98304]{0}', space=vmem, size = 0x18000, scoped, tag = 'input window, operand 3, single buffered']
    #allocation6 [shape = 's32[1]{0}', space=sflag, size = 0x4, scoped, tag = 'scoped memory for tpu_custom_call.1']
    #allocation7 [shape = 'u8[98304]{0}', space=vmem, size = 0x18000, scoped, tag = 'input window, operand 5, single buffered']
    #allocation8 [shape = 'u8[16384]{0}', space=vmem, size = 0x4000, scoped, tag = 'output window, operand 0']
    %12 = vsyncpa [#allocation3], 0
    %13 = vsyncpa [#allocation6], 0
    %14 = vsyncpa [#allocation4], 0
    %s15 = scalar_lea.sflag [#allocation4], 1
    %16 = vsyncpa %s15, 0
    loop: start=0, step=1, limit=4
    $region2: #{tpu_custom_call.1} parent=1 // loop_pre_header
      _
    $region3: #{tpu_custom_call.1} parent=1 // loop_header
      %s18 = sphi 0, %s22
      %p19 = scmp.ge.s32.totalorder %s18, 4
      %s28 = sphi 0, %s30
      %s31 = sphi 0, %s28
      %s32 = sphi 0, %s31
      %s48 = sphi 0, %s32
      %s52 = sphi 0, %s52
      %s54 = sphi 0, %s52
      %s55 = sphi 0, %s54
      %s69 = sphi 0, %s55
      %s73 = sphi 0, %s73
      %s75 = sphi 0, %s73
      %s76 = sphi 0, %s75
      %s90 = sphi 0, %s76
      %s94 = sphi 0, %s94
      %s96 = sphi 0, %s94
      %s97 = sphi 0, %s96
      %s111 = sphi 0, %s97
      %s115 = sphi 0, %s115
      %s117 = sphi 0, %s115
      %s118 = sphi 0, %s117
      %s132 = sphi 0, %s118
      %s136 = sphi 0, %s136
      %s138 = sphi 0, %s136
      %s139 = sphi 0, %s138
      %s153 = sphi 0, %s139
      %s157 = sphi 0, %s157
      %s159 = sphi 0, %s157
      %s160 = sphi 0, %s159
      %s174 = sphi 0, %s160
      %s180 = sphi 0, %s182
      %s183 = sphi 0, %s180
      %s184 = sphi 0, %s183
      %s200 = sphi 0, %s184
    $region4: #{tpu_custom_call.1} parent=1 // loop_header_branch
      %21 = sbr.rel (%p19) target = $region8
    $region5: #{tpu_custom_call.1} parent=1 // loop_body
      %s23 = ssub.s32 %s18, 1
      %s24 = ssub.s32 %s18, 2
      %s25 = sadd.s32 %s18, 1
      %s26 = ssub.s32 %s18, %s25
      %p27 = scmp.eq.s32.totalorder %s26, 0
      %s29 = sadd.s32 %s28, 1
      %s30 = scalar_select %p27, %s28, %s29
      %p33 = pneg %p27
      %p34 = scmp.eq.s32.totalorder %s18, 1
      %p35 = por %p33, %p34
      %p36 = scmp.ne.s32.totalorder %s28, %s31
      %p37 = scmp.eq.s32.totalorder %s18, 0
      %p38 = por %p36, %p37
      %p39 = scmp.ne.s32.totalorder %s28, %s31
      %p40 = scmp.eq.s32.totalorder %s23, 1
      %p41 = por %p39, %p40
      %p42 = scmp.ne.s32.totalorder %s31, %s32
      %p43 = scmp.eq.s32.totalorder %s23, 0
      %p44 = por %p42, %p43
      %p45 = scmp.ne.s32.totalorder %s31, %s32
      %p46 = scmp.eq.s32.totalorder %s24, 1
      %p47 = por %p45, %p46
      %p49 = scmp.ne.s32.totalorder %s32, %s48
      %p50 = scmp.eq.s32.totalorder %s24, 0
      %p51 = por %p49, %p50
      %s53 = sadd.s32 %s52, 1
      %p56 = scmp.eq.s32.totalorder %s18, 1
      %p57 = scmp.ne.s32.totalorder %s52, %s54
      %p58 = scmp.eq.s32.totalorder %s18, 0
      %p59 = por %p57, %p58
      %p60 = scmp.ne.s32.totalorder %s52, %s54
      %p61 = scmp.eq.s32.totalorder %s23, 1
      %p62 = por %p60, %p61
      %p63 = scmp.ne.s32.totalorder %s54, %s55
      %p64 = scmp.eq.s32.totalorder %s23, 0
      %p65 = por %p63, %p64
      %p66 = scmp.ne.s32.totalorder %s54, %s55
      %p67 = scmp.eq.s32.totalorder %s24, 1
      %p68 = por %p66, %p67
      %p70 = scmp.ne.s32.totalorder %s55, %s69
      %p71 = scmp.eq.s32.totalorder %s24, 0
      %p72 = por %p70, %p71
      %s74 = sadd.s32 %s73, 1
      %p77 = scmp.eq.s32.totalorder %s18, 1
      %p78 = scmp.ne.s32.totalorder %s73, %s75
      %p79 = scmp.eq.s32.totalorder %s18, 0
      %p80 = por %p78, %p79
      %p81 = scmp.ne.s32.totalorder %s73, %s75
      %p82 = scmp.eq.s32.totalorder %s23, 1
      %p83 = por %p81, %p82
      %p84 = scmp.ne.s32.totalorder %s75, %s76
      %p85 = scmp.eq.s32.totalorder %s23, 0
      %p86 = por %p84, %p85
      %p87 = scmp.ne.s32.totalorder %s75, %s76
      %p88 = scmp.eq.s32.totalorder %s24, 1
      %p89 = por %p87, %p88
      %p91 = scmp.ne.s32.totalorder %s76, %s90
      %p92 = scmp.eq.s32.totalorder %s24, 0
      %p93 = por %p91, %p92
      %s95 = sadd.s32 %s94, 1
      %p98 = scmp.eq.s32.totalorder %s18, 1
      %p99 = scmp.ne.s32.totalorder %s94, %s96
      %p100 = scmp.eq.s32.totalorder %s18, 0
      %p101 = por %p99, %p100
      %p102 = scmp.ne.s32.totalorder %s94, %s96
      %p103 = scmp.eq.s32.totalorder %s23, 1
      %p104 = por %p102, %p103
      %p105 = scmp.ne.s32.totalorder %s96, %s97
      %p106 = scmp.eq.s32.totalorder %s23, 0
      %p107 = por %p105, %p106
      %p108 = scmp.ne.s32.totalorder %s96, %s97
      %p109 = scmp.eq.s32.totalorder %s24, 1
      %p110 = por %p108, %p109
      %p112 = scmp.ne.s32.totalorder %s97, %s111
      %p113 = scmp.eq.s32.totalorder %s24, 0
      %p114 = por %p112, %p113
      %s116 = sadd.s32 %s115, 1
      %p119 = scmp.eq.s32.totalorder %s18, 1
      %p120 = scmp.ne.s32.totalorder %s115, %s117
      %p121 = scmp.eq.s32.totalorder %s18, 0
      %p122 = por %p120, %p121
      %p123 = scmp.ne.s32.totalorder %s115, %s117
      %p124 = scmp.eq.s32.totalorder %s23, 1
      %p125 = por %p123, %p124
      %p126 = scmp.ne.s32.totalorder %s117, %s118
      %p127 = scmp.eq.s32.totalorder %s23, 0
      %p128 = por %p126, %p127
      %p129 = scmp.ne.s32.totalorder %s117, %s118
      %p130 = scmp.eq.s32.totalorder %s24, 1
      %p131 = por %p129, %p130
      %p133 = scmp.ne.s32.totalorder %s118, %s132
      %p134 = scmp.eq.s32.totalorder %s24, 0
      %p135 = por %p133, %p134
      %s137 = sadd.s32 %s136, 1
      %p140 = scmp.eq.s32.totalorder %s18, 1
      %p141 = scmp.ne.s32.totalorder %s136, %s138
      %p142 = scmp.eq.s32.totalorder %s18, 0
      %p143 = por %p141, %p142
      %p144 = scmp.ne.s32.totalorder %s136, %s138
      %p145 = scmp.eq.s32.totalorder %s23, 1
      %p146 = por %p144, %p145
      %p147 = scmp.ne.s32.totalorder %s138, %s139
      %p148 = scmp.eq.s32.totalorder %s23, 0
      %p149 = por %p147, %p148
      %p150 = scmp.ne.s32.totalorder %s138, %s139
      %p151 = scmp.eq.s32.totalorder %s24, 1
      %p152 = por %p150, %p151
      %p154 = scmp.ne.s32.totalorder %s139, %s153
      %p155 = scmp.eq.s32.totalorder %s24, 0
      %p156 = por %p154, %p155
      %s158 = sadd.s32 %s157, 1
      %p161 = scmp.eq.s32.totalorder %s18, 1
      %p162 = scmp.ne.s32.totalorder %s157, %s159
      %p163 = scmp.eq.s32.totalorder %s18, 0
      %p164 = por %p162, %p163
      %p165 = scmp.ne.s32.totalorder %s157, %s159
      %p166 = scmp.eq.s32.totalorder %s23, 1
      %p167 = por %p165, %p166
      %p168 = scmp.ne.s32.totalorder %s159, %s160
      %p169 = scmp.eq.s32.totalorder %s23, 0
      %p170 = por %p168, %p169
      %p171 = scmp.ne.s32.totalorder %s159, %s160
      %p172 = scmp.eq.s32.totalorder %s24, 1
      %p173 = por %p171, %p172
      %p175 = scmp.ne.s32.totalorder %s160, %s174
      %p176 = scmp.eq.s32.totalorder %s24, 0
      %p177 = por %p175, %p176
      %s178 = ssub.s32 %s18, %s25
      %p179 = scmp.eq.s32.totalorder %s178, 0
      %s181 = sadd.s32 %s180, 1
      %s182 = scalar_select %p179, %s180, %s181
      %p185 = pneg %p179
      %p186 = scmp.eq.s32.totalorder %s18, 1
      %p187 = por %p185, %p186
      %p188 = scmp.ne.s32.totalorder %s180, %s183
      %p189 = scmp.eq.s32.totalorder %s18, 0
      %p190 = por %p188, %p189
      %p191 = scmp.ne.s32.totalorder %s180, %s183
      %p192 = scmp.eq.s32.totalorder %s23, 1
      %p193 = por %p191, %p192
      %p194 = scmp.ne.s32.totalorder %s183, %s184
      %p195 = scmp.eq.s32.totalorder %s23, 0
      %p196 = por %p194, %p195
      %p197 = scmp.ne.s32.totalorder %s183, %s184
      %p198 = scmp.eq.s32.totalorder %s24, 1
      %p199 = por %p197, %p198
      %p201 = scmp.ne.s32.totalorder %s184, %s200
      %p202 = scmp.eq.s32.totalorder %s24, 0
      %p203 = por %p201, %p202
      %p204 = scmp.le.s32.totalorder 1, %s18
      %p205 = scmp.lt.s32.totalorder %s18, 3
      %p206 = pnand %p204, %p205
      %p207 = pneg %p206
      // Predicated region
      $region9: #{tpu_custom_call.1} parent=5 // pred_check
        _
      $region10: #{tpu_custom_call.1} parent=5 // pred_check_branch
        %209 = sbr.rel (%p206) target = $region12
      $region11: #{tpu_custom_call.1} parent=5 // pred_region
        %s210 = ssub.s32 %s18, 1
        // Predicated region
        $region13: #{tpu_custom_call.1} parent=11 // pred_check
          %p211 = pneg %p65
        $region14: #{tpu_custom_call.1} parent=11 // pred_check_branch
          %213 = sbr.rel (%p211) target = $region16
        $region15: #{tpu_custom_call.1} parent=11 // pred_region
          _
        $region16: #{tpu_custom_call.1} parent=11 // pred_fallthru
          _
        // Predicated region
        $region17: #{tpu_custom_call.1} parent=11 // pred_check
          %p214 = pneg %p86
        $region18: #{tpu_custom_call.1} parent=11 // pred_check_branch
          %216 = sbr.rel (%p214) target = $region20
        $region19: #{tpu_custom_call.1} parent=11 // pred_region
          %s218 = ssub.s32 1024, 1024
          %219 = vsyncadd [#allocation3], %s218
          %s220 = sshll.u32 [#allocation2], 4
          %s221 = int_to_ptr.vmem [resolvable:$true] %s220
          %226 = dma.hbm_to_vmem [thread:$0]  %s2, 1024, %s221, [#allocation3], 128, 128, 8
        $region20: #{tpu_custom_call.1} parent=11 // pred_fallthru
          _
        // Predicated region
        $region21: #{tpu_custom_call.1} parent=11 // pred_check
          %p227 = pneg %p107
        $region22: #{tpu_custom_call.1} parent=11 // pred_check_branch
          %229 = sbr.rel (%p227) target = $region24
        $region23: #{tpu_custom_call.1} parent=11 // pred_region
          %s231 = ssub.s32 3072, 3072
          %232 = vsyncadd [#allocation6], %s231
          %s233 = sshll.u32 [#allocation5], 4
          %s234 = int_to_ptr.vmem [resolvable:$true] %s233
          %239 = dma.hbm_to_vmem [thread:$0]  %s3, 3072, %s234, [#allocation6], 128, 128, 8
        $region24: #{tpu_custom_call.1} parent=11 // pred_fallthru
          _
        // Predicated region
        $region25: #{tpu_custom_call.1} parent=11 // pred_check
          %p240 = pneg %p128
        $region26: #{tpu_custom_call.1} parent=11 // pred_check_branch
          %242 = sbr.rel (%p240) target = $region28
        $region27: #{tpu_custom_call.1} parent=11 // pred_region
          _
        $region28: #{tpu_custom_call.1} parent=11 // pred_fallthru
          _
        // Predicated region
        $region29: #{tpu_custom_call.1} parent=11 // pred_check
          %p243 = pneg %p149
        $region30: #{tpu_custom_call.1} parent=11 // pred_check_branch
          %245 = sbr.rel (%p243) target = $region32
        $region31: #{tpu_custom_call.1} parent=11 // pred_region
          %s247 = ssub.s32 3072, 3072
          %248 = vsyncadd [#allocation6], %s247
          %s249 = sshll.u32 [#allocation7], 4
          %s250 = int_to_ptr.vmem [resolvable:$true] %s249
          %255 = dma.hbm_to_vmem [thread:$0]  %s5, 3072, %s250, [#allocation6], 128, 128, 8
        $region32: #{tpu_custom_call.1} parent=11 // pred_fallthru
          _
        // Predicated region
        $region33: #{tpu_custom_call.1} parent=11 // pred_check
          %p256 = pneg %p170
        $region34: #{tpu_custom_call.1} parent=11 // pred_check_branch
          %258 = sbr.rel (%p256) target = $region36
        $region35: #{tpu_custom_call.1} parent=11 // pred_region
          _
        $region36: #{tpu_custom_call.1} parent=11 // pred_fallthru
          _
      $region12: #{tpu_custom_call.1} parent=5 // pred_fallthru
        _
      %p259 = scmp.lt.s32.totalorder %s18, 2
      // Predicated region
      $region37: #{tpu_custom_call.1} parent=5 // pred_check
        %p260 = pneg %p259
      $region38: #{tpu_custom_call.1} parent=5 // pred_check_branch
        %262 = sbr.rel (%p260) target = $region40
      $region39: #{tpu_custom_call.1} parent=5 // pred_region
        // Predicated region
        $region41: #{tpu_custom_call.1} parent=39 // pred_check
          %p263 = pneg %p38
        $region42: #{tpu_custom_call.1} parent=39 // pred_check_branch
          %265 = sbr.rel (%p263) target = $region44
        $region43: #{tpu_custom_call.1} parent=39 // pred_region
          %s266 = smul.u32 2, %s18
          %p267 = scmp.lt.s32.totalorder %s266, 3
          %s268 = scalar_select %p267, %s266, 3
          %s269 = smul.addr %s268, 8
          %s270 = scalar_lea.vmem %s0, %s269
          %s271 = smul.u32 2, %s18
        $region44: #{tpu_custom_call.1} parent=39 // pred_fallthru
          _
      $region40: #{tpu_custom_call.1} parent=5 // pred_fallthru
        _
      %p272 = scmp.le.s32.totalorder 1, %s18
      %p273 = scmp.lt.s32.totalorder %s18, 3
      %p274 = pnand %p272, %p273
      %p275 = pneg %p274
      // Predicated region
      $region45: #{tpu_custom_call.1} parent=5 // pred_check
        _
      $region46: #{tpu_custom_call.1} parent=5 // pred_check_branch
        %277 = sbr.rel (%p274) target = $region48
      $region47: #{tpu_custom_call.1} parent=5 // pred_region
        %s278 = ssub.s32 %s18, 1
        // Predicated region
        $region49: #{tpu_custom_call.1} parent=47 // pred_check
          %p279 = pneg %p86
        $region50: #{tpu_custom_call.1} parent=47 // pred_check_branch
          %281 = sbr.rel (%p279) target = $region52
        $region51: #{tpu_custom_call.1} parent=47 // pred_region
          %282 = dma.done [#allocation3], 1024
        $region52: #{tpu_custom_call.1} parent=47 // pred_fallthru
          _
        // Predicated region
        $region53: #{tpu_custom_call.1} parent=47 // pred_check
          %p283 = pneg %p107
        $region54: #{tpu_custom_call.1} parent=47 // pred_check_branch
          %285 = sbr.rel (%p283) target = $region56
        $region55: #{tpu_custom_call.1} parent=47 // pred_region
          %286 = dma.done [#allocation6], 3072
        $region56: #{tpu_custom_call.1} parent=47 // pred_fallthru
          _
        // Predicated region
        $region57: #{tpu_custom_call.1} parent=47 // pred_check
          %p287 = pneg %p149
        $region58: #{tpu_custom_call.1} parent=47 // pred_check_branch
          %289 = sbr.rel (%p287) target = $region60
        $region59: #{tpu_custom_call.1} parent=47 // pred_region
          %290 = dma.done [#allocation6], 3072
        $region60: #{tpu_custom_call.1} parent=47 // pred_fallthru
          _
        %s291 = smul.u32 2, %s23
        %p292 = scmp.lt.s32.totalorder %s291, 3
        %s293 = scalar_select %p292, %s291, 3
        %s294 = smul.addr %s293, 8
        %s295 = scalar_lea.vmem %s0, %s294
        %p296 = pneg %p44
        %p297 = pneg %p41
        %p298 = pneg %p65
        %p299 = pneg %p62
        %p300 = pneg %p86
        %p301 = pneg %p83
        %p302 = pneg %p107
        %p303 = pneg %p104
        %p304 = pneg %p128
        %p305 = pneg %p125
        %p306 = pneg %p149
        %p307 = pneg %p146
        %p308 = pneg %p170
        %p309 = pneg %p167
        %p310 = pneg %p196
        %p311 = pneg %p193
        %s312 = sand.u32 %s183, 1
        %s313 = scalar_lea.sflag [#allocation4], %s312
        %s314 = sand.u32 %s183, 1
        %s315 = smul.addr %s314, 16
        %s316 = scalar_lea.vmem [#allocation8], %s315
        %s317 = smul.u32 2, %s23
        %p318 = scmp.lt.s32.totalorder %s317, 3
        %s319 = scalar_select %p318, %s317, 3
        %s320 = smul.addr %s319, 8
        %s321 = scalar_lea.vmem %s0, %s320
        %s322 = smul.u32 2, %s23
        %s323 = smul.u32 2, %s23
        %v324 = vld [vmem:[%s321] sm:$0xff]
        %v325 = vld [vmem:[%s321 + $0x8] sm:$0xff]
        %v326 = vld [vmem:[%s1] sm:$0xff]
        %v327 = vld [vmem:[%s1 + $0x8] sm:$0xff]
        %v328 = vld [vmem:[%s1 + $0x10] sm:$0xff]
        %v329 = vld [vmem:[%s1 + $0x18] sm:$0xff]
        %vm330 = vcmask 130048
        %v332 = vsel %vm330, %v326, 0
        %v335 = vsel %vm330, %v327, 0
        %v338 = vsel %vm330, %v328, 0
        %v341 = vsel %vm330, %v329, 0
        %343 = vmatprep.subr.mxu0 0.0
        %344 = vmatpush1.msra.mxu0 0.0
        %345 = vmatprep.subr.mxu0 0.0
        %346 = vmatpush1.msra.mxu0 0.0
        %347 = vmatprep.subr.mxu0 0.0
        %348 = vmatpush1.msra.mxu0 0.0
        %349 = vmatprep.subr.mxu0 0.0
        %350 = vmatpush1.msra.mxu0 0.0
        %351 = vmatprep.subr.mxu0 0.0
        %352 = vmatpush1.msra.mxu0 0.0
        %353 = vmatprep.subr.mxu0 0.0
        %354 = vmatpush1.msra.mxu0 0.0
        %355 = vmatprep.subr.mxu0 0.0
        %356 = vmatpush1.msra.mxu0 0.0
        %357 = vmatprep.subr.mxu0 0.0
        %358 = vmatpush1.msra.mxu0 0.0
        %359 = vmatprep.subr.mxu0 0.0
        %360 = vmatpush1.msra.mxu0 0.0
        %361 = vmatprep.subr.mxu0 0.0
        %362 = vmatpush1.msra.mxu0 0.0
        %363 = vmatprep.subr.mxu0 0.0
        %364 = vmatpush1.msra.mxu0 0.0
        %365 = vmatprep.subr.mxu0 0.0
        %366 = vmatpush1.msra.mxu0 0.0
        %367 = vmatprep.subr.mxu0 0.0
        %368 = vmatpush1.msra.mxu0 0.0
        %369 = vmatprep.subr.mxu0 0.0
        %370 = vmatpush1.msra.mxu0 0.0
        %371 = vmatprep.subr.mxu0 0.0
        %372 = vmatpush1.msra.mxu0 %v325
        %373 = vmatprep.subr.mxu0 0.0
        %374 = vmatpush1.msra.mxu0 %v324
        %375 = vmatprep.subr.mxu0 0.0
        %376 = vmatpush2.msra.mxu0 0.0
        %377 = vmatprep.subr.mxu0 0.0
        %378 = vmatpush2.msra.mxu0 0.0
        %379 = vmatprep.subr.mxu0 0.0
        %380 = vmatpush2.msra.mxu0 0.0
        %381 = vmatprep.subr.mxu0 0.0
        %382 = vmatpush2.msra.mxu0 0.0
        %383 = vmatprep.subr.mxu0 0.0
        %384 = vmatpush2.msra.mxu0 0.0
        %385 = vmatprep.subr.mxu0 0.0
        %386 = vmatpush2.msra.mxu0 0.0
        %387 = vmatprep.subr.mxu0 0.0
        %388 = vmatpush2.msra.mxu0 0.0
        %389 = vmatprep.subr.mxu0 0.0
        %390 = vmatpush2.msra.mxu0 0.0
        %391 = vmatprep.subr.mxu0 0.0
        %392 = vmatpush2.msra.mxu0 0.0
        %393 = vmatprep.subr.mxu0 0.0
        %394 = vmatpush2.msra.mxu0 0.0
        %395 = vmatprep.subr.mxu0 0.0
        %396 = vmatpush2.msra.mxu0 0.0
        %397 = vmatprep.subr.mxu0 0.0
        %398 = vmatpush2.msra.mxu0 0.0
        %399 = vmatprep.subr.mxu0 0.0
        %400 = vmatpush2.msra.mxu0 0.0
        %401 = vmatprep.subr.mxu0 0.0
        %402 = vmatpush2.msra.mxu0 0.0
        %403 = vmatprep.subr.mxu0 0.0
        %404 = vmatpush2.msra.mxu0 0.0
        %405 = vmatprep.subr.mxu0 0.0
        %406 = vmatpush2.msra.mxu0 0.0
        %407 = vmatprep.mubr.f32.mxu0 0.0
        %408 = vmatmul.mubr.f32.gmra.mxu0 %v332
        %v409 = vpop.f32.mrf.mxu0
        %v410 = vadd.f32 0.0, %v409
        %v411 = vpop.f32.mrf.mxu0
        %412 = vmatprep.mubr.f32.mxu0 0.0
        %413 = vmatmul.mubr.f32.gmra.mxu0 %v335
        %v414 = vpop.f32.mrf.mxu0
        %v415 = vadd.f32 0.0, %v414
        %v416 = vpop.f32.mrf.mxu0
        %417 = vmatprep.mubr.f32.mxu0 0.0
        %418 = vmatmul.mubr.f32.gmra.mxu0 %v338
        %v419 = vpop.f32.mrf.mxu0
        %v420 = vadd.f32 0.0, %v419
        %v421 = vpop.f32.mrf.mxu0
        %422 = vmatprep.mubr.f32.mxu0 0.0
        %423 = vmatmul.mubr.f32.gmra.mxu0 %v341
        %v424 = vpop.f32.mrf.mxu0
        %v425 = vadd.f32 0.0, %v424
        %v426 = vpop.f32.mrf.mxu0
        %427 = vdwg.mxu0
        %v428 = vld [vmem:[#allocation2] sm:$0xff]
        %v429 = vld [vmem:[#allocation2 + $0x8] sm:$0xff]
        %v430 = vld [vmem:[#allocation2 + $0x10] sm:$0xff]
        %v431 = vld [vmem:[#allocation2 + $0x18] sm:$0xff]
        %s432 = scalar_lea.vmem [#allocation2], 32
        %v433 = vld [vmem:[%s432] sm:$0xff]
        %v434 = vld [vmem:[%s432 + $0x8] sm:$0xff]
        %v435 = vld [vmem:[%s432 + $0x10] sm:$0xff]
        %v436 = vld [vmem:[%s432 + $0x18] sm:$0xff]
        %vm437 = vcmask 261120
        %v439 = vsel %vm437, %v428, 0
        %v442 = vsel %vm437, %v429, 0
        %v445 = vsel %vm437, %v430, 0
        %v448 = vsel %vm437, %v431, 0
        %450 = vmatprep.subr.mxu0 0.0
        %451 = vmatpush1.msra.mxu0 0.0
        %452 = vmatprep.subr.mxu0 0.0
        %453 = vmatpush1.msra.mxu0 0.0
        %454 = vmatprep.subr.mxu0 0.0
        %455 = vmatpush1.msra.mxu0 0.0
        %456 = vmatprep.subr.mxu0 0.0
        %457 = vmatpush1.msra.mxu0 0.0
        %458 = vmatprep.subr.mxu0 0.0
        %459 = vmatpush1.msra.mxu0 0.0
        %460 = vmatprep.subr.mxu0 0.0
        %461 = vmatpush1.msra.mxu0 0.0
        %462 = vmatprep.subr.mxu0 0.0
        %463 = vmatpush1.msra.mxu0 0.0
        %464 = vmatprep.subr.mxu0 0.0
        %465 = vmatpush1.msra.mxu0 0.0
        %466 = vmatprep.subr.mxu0 0.0
        %467 = vmatpush1.msra.mxu0 0.0
        %468 = vmatprep.subr.mxu0 0.0
        %469 = vmatpush1.msra.mxu0 0.0
        %470 = vmatprep.subr.mxu0 0.0
        %471 = vmatpush1.msra.mxu0 0.0
        %472 = vmatprep.subr.mxu0 0.0
        %473 = vmatpush1.msra.mxu0 0.0
        %474 = vmatprep.subr.mxu0 0.0
        %475 = vmatpush1.msra.mxu0 %v425
        %476 = vmatprep.subr.mxu0 0.0
        %477 = vmatpush1.msra.mxu0 %v420
        %478 = vmatprep.subr.mxu0 0.0
        %479 = vmatpush1.msra.mxu0 %v415
        %480 = vmatprep.subr.mxu0 0.0
        %481 = vmatpush1.msra.mxu0 %v410
        %482 = vmatprep.subr.mxu0 0.0
        %483 = vmatpush2.msra.mxu0 0.0
        %484 = vmatprep.subr.mxu0 0.0
        %485 = vmatpush2.msra.mxu0 0.0
        %486 = vmatprep.subr.mxu0 0.0
        %487 = vmatpush2.msra.mxu0 0.0
        %488 = vmatprep.subr.mxu0 0.0
        %489 = vmatpush2.msra.mxu0 0.0
        %490 = vmatprep.subr.mxu0 0.0
        %491 = vmatpush2.msra.mxu0 0.0
        %492 = vmatprep.subr.mxu0 0.0
        %493 = vmatpush2.msra.mxu0 0.0
        %494 = vmatprep.subr.mxu0 0.0
        %495 = vmatpush2.msra.mxu0 0.0
        %496 = vmatprep.subr.mxu0 0.0
        %497 = vmatpush2.msra.mxu0 0.0
        %498 = vmatprep.subr.mxu0 0.0
        %499 = vmatpush2.msra.mxu0 0.0
        %500 = vmatprep.subr.mxu0 0.0
        %501 = vmatpush2.msra.mxu0 0.0
        %502 = vmatprep.subr.mxu0 0.0
        %503 = vmatpush2.msra.mxu0 0.0
        %504 = vmatprep.subr.mxu0 0.0
        %505 = vmatpush2.msra.mxu0 0.0
        %506 = vmatprep.subr.mxu0 0.0
        %507 = vmatpush2.msra.mxu0 0.0
        %508 = vmatprep.subr.mxu0 0.0
        %509 = vmatpush2.msra.mxu0 0.0
        %510 = vmatprep.subr.mxu0 0.0
        %511 = vmatpush2.msra.mxu0 0.0
        %512 = vmatprep.subr.mxu0 0.0
        %513 = vmatpush2.msra.mxu0 0.0
        %514 = vmatprep.mubr.f32.mxu0 0.0
        %515 = vmatmul.mubr.f32.gmra.mxu0 %v439
        %v516 = vpop.f32.mrf.mxu0
        %v517 = vadd.f32 0.0, %v516
        %v518 = vpop.f32.mrf.mxu0
        %519 = vmatprep.mubr.f32.mxu0 0.0
        %520 = vmatmul.mubr.f32.gmra.mxu0 %v442
        %v521 = vpop.f32.mrf.mxu0
        %v522 = vadd.f32 0.0, %v521
        %v523 = vpop.f32.mrf.mxu0
        %524 = vmatprep.mubr.f32.mxu0 0.0
        %525 = vmatmul.mubr.f32.gmra.mxu0 %v445
        %v526 = vpop.f32.mrf.mxu0
        %v527 = vadd.f32 0.0, %v526
        %v528 = vpop.f32.mrf.mxu0
        %529 = vmatprep.mubr.f32.mxu0 0.0
        %530 = vmatmul.mubr.f32.gmra.mxu0 %v448
        %v531 = vpop.f32.mrf.mxu0
        %v532 = vadd.f32 0.0, %v531
        %v533 = vpop.f32.mrf.mxu0
        %534 = vdwg.mxu0
        %v536 = vsel %vm437, %v433, 0
        %v539 = vsel %vm437, %v434, 0
        %v542 = vsel %vm437, %v435, 0
        %v545 = vsel %vm437, %v436, 0
        %547 = vmatprep.subr.mxu0 0.0
        %548 = vmatpush1.msra.mxu0 0.0
        %549 = vmatprep.subr.mxu0 0.0
        %550 = vmatpush1.msra.mxu0 0.0
        %551 = vmatprep.subr.mxu0 0.0
        %552 = vmatpush1.msra.mxu0 0.0
        %553 = vmatprep.subr.mxu0 0.0
        %554 = vmatpush1.msra.mxu0 0.0
        %555 = vmatprep.subr.mxu0 0.0
        %556 = vmatpush1.msra.mxu0 0.0
        %557 = vmatprep.subr.mxu0 0.0
        %558 = vmatpush1.msra.mxu0 0.0
        %559 = vmatprep.subr.mxu0 0.0
        %560 = vmatpush1.msra.mxu0 0.0
        %561 = vmatprep.subr.mxu0 0.0
        %562 = vmatpush1.msra.mxu0 0.0
        %563 = vmatprep.subr.mxu0 0.0
        %564 = vmatpush1.msra.mxu0 0.0
        %565 = vmatprep.subr.mxu0 0.0
        %566 = vmatpush1.msra.mxu0 0.0
        %567 = vmatprep.subr.mxu0 0.0
        %568 = vmatpush1.msra.mxu0 0.0
        %569 = vmatprep.subr.mxu0 0.0
        %570 = vmatpush1.msra.mxu0 0.0
        %571 = vmatprep.subr.mxu0 0.0
        %572 = vmatpush1.msra.mxu0 %v425
        %573 = vmatprep.subr.mxu0 0.0
        %574 = vmatpush1.msra.mxu0 %v420
        %575 = vmatprep.subr.mxu0 0.0
        %576 = vmatpush1.msra.mxu0 %v415
        %577 = vmatprep.subr.mxu0 0.0
        %578 = vmatpush1.msra.mxu0 %v410
        %579 = vmatprep.subr.mxu0 0.0
        %580 = vmatpush2.msra.mxu0 0.0
        %581 = vmatprep.subr.mxu0 0.0
        %582 = vmatpush2.msra.mxu0 0.0
        %583 = vmatprep.subr.mxu0 0.0
        %584 = vmatpush2.msra.mxu0 0.0
        %585 = vmatprep.subr.mxu0 0.0
        %586 = vmatpush2.msra.mxu0 0.0
        %587 = vmatprep.subr.mxu0 0.0
        %588 = vmatpush2.msra.mxu0 0.0
        %589 = vmatprep.subr.mxu0 0.0
        %590 = vmatpush2.msra.mxu0 0.0
        %591 = vmatprep.subr.mxu0 0.0
        %592 = vmatpush2.msra.mxu0 0.0
        %593 = vmatprep.subr.mxu0 0.0
        %594 = vmatpush2.msra.mxu0 0.0
        %595 = vmatprep.subr.mxu0 0.0
        %596 = vmatpush2.msra.mxu0 0.0
        %597 = vmatprep.subr.mxu0 0.0
        %598 = vmatpush2.msra.mxu0 0.0
        %599 = vmatprep.subr.mxu0 0.0
        %600 = vmatpush2.msra.mxu0 0.0
        %601 = vmatprep.subr.mxu0 0.0
        %602 = vmatpush2.msra.mxu0 0.0
        %603 = vmatprep.subr.mxu0 0.0
        %604 = vmatpush2.msra.mxu0 0.0
        %605 = vmatprep.subr.mxu0 0.0
        %606 = vmatpush2.msra.mxu0 0.0
        %607 = vmatprep.subr.mxu0 0.0
        %608 = vmatpush2.msra.mxu0 0.0
        %609 = vmatprep.subr.mxu0 0.0
        %610 = vmatpush2.msra.mxu0 0.0
        %611 = vmatprep.mubr.f32.mxu0 0.0
        %612 = vmatmul.mubr.f32.gmra.mxu0 %v536
        %v613 = vpop.f32.mrf.mxu0
        %v614 = vadd.f32 0.0, %v613
        %v615 = vpop.f32.mrf.mxu0
        %616 = vmatprep.mubr.f32.mxu0 0.0
        %617 = vmatmul.mubr.f32.gmra.mxu0 %v539
        %v618 = vpop.f32.mrf.mxu0
        %v619 = vadd.f32 0.0, %v618
        %v620 = vpop.f32.mrf.mxu0
        %621 = vmatprep.mubr.f32.mxu0 0.0
        %622 = vmatmul.mubr.f32.gmra.mxu0 %v542
        %v623 = vpop.f32.mrf.mxu0
        %v624 = vadd.f32 0.0, %v623
        %v625 = vpop.f32.mrf.mxu0
        %626 = vmatprep.mubr.f32.mxu0 0.0
        %627 = vmatmul.mubr.f32.gmra.mxu0 %v545
        %v628 = vpop.f32.mrf.mxu0
        %v629 = vadd.f32 0.0, %v628
        %v630 = vpop.f32.mrf.mxu0
        %631 = vdwg.mxu0
        %v632 = vld [vmem:[#allocation5] sm:$0xff]
        %v633 = vld [vmem:[#allocation5 + $0x8] sm:$0xff]
        %v634 = vld [vmem:[#allocation5 + $0x10] sm:$0xff]
        %v635 = vld [vmem:[#allocation5 + $0x18] sm:$0xff]
        %v636 = vld [vmem:[#allocation5 + $0x20] sm:$0xff]
        %v637 = vld [vmem:[#allocation5 + $0x28] sm:$0xff]
        %v638 = vld [vmem:[#allocation5 + $0x30] sm:$0xff]
        %v639 = vld [vmem:[#allocation5 + $0x38] sm:$0xff]
        %s640 = scalar_lea.vmem [#allocation5], 64
        %v641 = vld [vmem:[%s640] sm:$0xff]
        %v642 = vld [vmem:[%s640 + $0x8] sm:$0xff]
        %v643 = vld [vmem:[%s640 + $0x10] sm:$0xff]
        %v644 = vld [vmem:[%s640 + $0x18] sm:$0xff]
        %v645 = vld [vmem:[%s640 + $0x20] sm:$0xff]
        %v646 = vld [vmem:[%s640 + $0x28] sm:$0xff]
        %v647 = vld [vmem:[%s640 + $0x30] sm:$0xff]
        %v648 = vld [vmem:[%s640 + $0x38] sm:$0xff]
        %vm649 = vcmask 523264
        %v651 = vsel %vm649, %v410, 0
        %v654 = vsel %vm649, %v415, 0
        %v657 = vsel %vm649, %v420, 0
        %v660 = vsel %vm649, %v425, 0
        %662 = vmatprep.subr.mxu0 0.0
        %663 = vmatpush1.msra.mxu0 0.0
        %664 = vmatprep.subr.mxu0 0.0
        %665 = vmatpush1.msra.mxu0 0.0
        %666 = vmatprep.subr.mxu0 0.0
        %667 = vmatpush1.msra.mxu0 0.0
        %668 = vmatprep.subr.mxu0 0.0
        %669 = vmatpush1.msra.mxu0 0.0
        %670 = vmatprep.subr.mxu0 0.0
        %671 = vmatpush1.msra.mxu0 0.0
        %672 = vmatprep.subr.mxu0 0.0
        %673 = vmatpush1.msra.mxu0 0.0
        %674 = vmatprep.subr.mxu0 0.0
        %675 = vmatpush1.msra.mxu0 0.0
        %676 = vmatprep.subr.mxu0 0.0
        %677 = vmatpush1.msra.mxu0 0.0
        %678 = vmatprep.subr.mxu0 0.0
        %679 = vmatpush1.msra.mxu0 %v648
        %680 = vmatprep.subr.mxu0 0.0
        %681 = vmatpush1.msra.mxu0 %v647
        %682 = vmatprep.subr.mxu0 0.0
        %683 = vmatpush1.msra.mxu0 %v646
        %684 = vmatprep.subr.mxu0 0.0
        %685 = vmatpush1.msra.mxu0 %v645
        %686 = vmatprep.subr.mxu0 0.0
        %687 = vmatpush1.msra.mxu0 %v644
        %688 = vmatprep.subr.mxu0 0.0
        %689 = vmatpush1.msra.mxu0 %v643
        %690 = vmatprep.subr.mxu0 0.0
        %691 = vmatpush1.msra.mxu0 %v642
        %692 = vmatprep.subr.mxu0 0.0
        %693 = vmatpush1.msra.mxu0 %v641
        %694 = vmatprep.subr.mxu0 0.0
        %695 = vmatpush2.msra.mxu0 0.0
        %696 = vmatprep.subr.mxu0 0.0
        %697 = vmatpush2.msra.mxu0 0.0
        %698 = vmatprep.subr.mxu0 0.0
        %699 = vmatpush2.msra.mxu0 0.0
        %700 = vmatprep.subr.mxu0 0.0
        %701 = vmatpush2.msra.mxu0 0.0
        %702 = vmatprep.subr.mxu0 0.0
        %703 = vmatpush2.msra.mxu0 0.0
        %704 = vmatprep.subr.mxu0 0.0
        %705 = vmatpush2.msra.mxu0 0.0
        %706 = vmatprep.subr.mxu0 0.0
        %707 = vmatpush2.msra.mxu0 0.0
        %708 = vmatprep.subr.mxu0 0.0
        %709 = vmatpush2.msra.mxu0 0.0
        %710 = vmatprep.subr.mxu0 0.0
        %711 = vmatpush2.msra.mxu0 0.0
        %712 = vmatprep.subr.mxu0 0.0
        %713 = vmatpush2.msra.mxu0 0.0
        %714 = vmatprep.subr.mxu0 0.0
        %715 = vmatpush2.msra.mxu0 0.0
        %716 = vmatprep.subr.mxu0 0.0
        %717 = vmatpush2.msra.mxu0 0.0
        %718 = vmatprep.subr.mxu0 0.0
        %719 = vmatpush2.msra.mxu0 0.0
        %720 = vmatprep.subr.mxu0 0.0
        %721 = vmatpush2.msra.mxu0 0.0
        %722 = vmatprep.subr.mxu0 0.0
        %723 = vmatpush2.msra.mxu0 0.0
        %724 = vmatprep.subr.mxu0 0.0
        %725 = vmatpush2.msra.mxu0 0.0
        %726 = vmatprep.mubr.f32.mxu0 0.0
        %727 = vmatmul.mubr.f32.gmra.mxu0 %v651
        %v728 = vpop.f32.mrf.mxu0
        %v729 = vadd.f32 0.0, %v728
        %v730 = vpop.f32.mrf.mxu0
        %731 = vmatprep.mubr.f32.mxu0 0.0
        %732 = vmatmul.mubr.f32.gmra.mxu0 %v654
        %v733 = vpop.f32.mrf.mxu0
        %v734 = vadd.f32 0.0, %v733
        %v735 = vpop.f32.mrf.mxu0
        %736 = vmatprep.mubr.f32.mxu0 0.0
        %737 = vmatmul.mubr.f32.gmra.mxu0 %v657
        %v738 = vpop.f32.mrf.mxu0
        %v739 = vadd.f32 0.0, %v738
        %v740 = vpop.f32.mrf.mxu0
        %741 = vmatprep.mubr.f32.mxu0 0.0
        %742 = vmatmul.mubr.f32.gmra.mxu0 %v660
        %v743 = vpop.f32.mrf.mxu0
        %v744 = vadd.f32 0.0, %v743
        %v745 = vpop.f32.mrf.mxu0
        %746 = vdwg.mxu0
        %v748 = vsel %vm649, %v517, 0
        %v751 = vsel %vm649, %v522, 0
        %v754 = vsel %vm649, %v527, 0
        %v757 = vsel %vm649, %v532, 0
        %759 = vmatprep.subr.mxu0 0.0
        %760 = vmatpush1.msra.mxu0 0.0
        %761 = vmatprep.subr.mxu0 0.0
        %762 = vmatpush1.msra.mxu0 0.0
        %763 = vmatprep.subr.mxu0 0.0
        %764 = vmatpush1.msra.mxu0 0.0
        %765 = vmatprep.subr.mxu0 0.0
        %766 = vmatpush1.msra.mxu0 0.0
        %767 = vmatprep.subr.mxu0 0.0
        %768 = vmatpush1.msra.mxu0 0.0
        %769 = vmatprep.subr.mxu0 0.0
        %770 = vmatpush1.msra.mxu0 0.0
        %771 = vmatprep.subr.mxu0 0.0
        %772 = vmatpush1.msra.mxu0 0.0
        %773 = vmatprep.subr.mxu0 0.0
        %774 = vmatpush1.msra.mxu0 0.0
        %775 = vmatprep.subr.mxu0 0.0
        %776 = vmatpush1.msra.mxu0 %v639
        %777 = vmatprep.subr.mxu0 0.0
        %778 = vmatpush1.msra.mxu0 %v638
        %779 = vmatprep.subr.mxu0 0.0
        %780 = vmatpush1.msra.mxu0 %v637
        %781 = vmatprep.subr.mxu0 0.0
        %782 = vmatpush1.msra.mxu0 %v636
        %783 = vmatprep.subr.mxu0 0.0
        %784 = vmatpush1.msra.mxu0 %v635
        %785 = vmatprep.subr.mxu0 0.0
        %786 = vmatpush1.msra.mxu0 %v634
        %787 = vmatprep.subr.mxu0 0.0
        %788 = vmatpush1.msra.mxu0 %v633
        %789 = vmatprep.subr.mxu0 0.0
        %790 = vmatpush1.msra.mxu0 %v632
        %791 = vmatprep.subr.mxu0 0.0
        %792 = vmatpush2.msra.mxu0 0.0
        %793 = vmatprep.subr.mxu0 0.0
        %794 = vmatpush2.msra.mxu0 0.0
        %795 = vmatprep.subr.mxu0 0.0
        %796 = vmatpush2.msra.mxu0 0.0
        %797 = vmatprep.subr.mxu0 0.0
        %798 = vmatpush2.msra.mxu0 0.0
        %799 = vmatprep.subr.mxu0 0.0
        %800 = vmatpush2.msra.mxu0 0.0
        %801 = vmatprep.subr.mxu0 0.0
        %802 = vmatpush2.msra.mxu0 0.0
        %803 = vmatprep.subr.mxu0 0.0
        %804 = vmatpush2.msra.mxu0 0.0
        %805 = vmatprep.subr.mxu0 0.0
        %806 = vmatpush2.msra.mxu0 0.0
        %807 = vmatprep.subr.mxu0 0.0
        %808 = vmatpush2.msra.mxu0 0.0
        %809 = vmatprep.subr.mxu0 0.0
        %810 = vmatpush2.msra.mxu0 0.0
        %811 = vmatprep.subr.mxu0 0.0
        %812 = vmatpush2.msra.mxu0 0.0
        %813 = vmatprep.subr.mxu0 0.0
        %814 = vmatpush2.msra.mxu0 0.0
        %815 = vmatprep.subr.mxu0 0.0
        %816 = vmatpush2.msra.mxu0 0.0
        %817 = vmatprep.subr.mxu0 0.0
        %818 = vmatpush2.msra.mxu0 0.0
        %819 = vmatprep.subr.mxu0 0.0
        %820 = vmatpush2.msra.mxu0 0.0
        %821 = vmatprep.subr.mxu0 0.0
        %822 = vmatpush2.msra.mxu0 0.0
        %823 = vmatprep.mubr.f32.mxu0 0.0
        %824 = vmatmul.mubr.f32.gmra.mxu0 %v748
        %v825 = vpop.f32.mrf.mxu0
        %v826 = vadd.f32 %v729, %v825
        %v827 = vpop.f32.mrf.mxu0
        %828 = vmatprep.mubr.f32.mxu0 0.0
        %829 = vmatmul.mubr.f32.gmra.mxu0 %v751
        %v830 = vpop.f32.mrf.mxu0
        %v831 = vadd.f32 %v734, %v830
        %v832 = vpop.f32.mrf.mxu0
        %833 = vmatprep.mubr.f32.mxu0 0.0
        %834 = vmatmul.mubr.f32.gmra.mxu0 %v754
        %v835 = vpop.f32.mrf.mxu0
        %v836 = vadd.f32 %v739, %v835
        %v837 = vpop.f32.mrf.mxu0
        %838 = vmatprep.mubr.f32.mxu0 0.0
        %839 = vmatmul.mubr.f32.gmra.mxu0 %v757
        %v840 = vpop.f32.mrf.mxu0
        %v841 = vadd.f32 %v744, %v840
        %v842 = vpop.f32.mrf.mxu0
        %843 = vdwg.mxu0
        %s844 = scalar_lea.vmem [#allocation5], 128
        %v845 = vld [vmem:[%s844] sm:$0xff]
        %v846 = vld [vmem:[%s844 + $0x8] sm:$0xff]
        %v847 = vld [vmem:[%s844 + $0x10] sm:$0xff]
        %v848 = vld [vmem:[%s844 + $0x18] sm:$0xff]
        %v849 = vld [vmem:[%s844 + $0x20] sm:$0xff]
        %v850 = vld [vmem:[%s844 + $0x28] sm:$0xff]
        %v851 = vld [vmem:[%s844 + $0x30] sm:$0xff]
        %v852 = vld [vmem:[%s844 + $0x38] sm:$0xff]
        %v854 = vsel %vm649, %v614, 0
        %v857 = vsel %vm649, %v619, 0
        %v860 = vsel %vm649, %v624, 0
        %v863 = vsel %vm649, %v629, 0
        %865 = vmatprep.subr.mxu0 0.0
        %866 = vmatpush1.msra.mxu0 0.0
        %867 = vmatprep.subr.mxu0 0.0
        %868 = vmatpush1.msra.mxu0 0.0
        %869 = vmatprep.subr.mxu0 0.0
        %870 = vmatpush1.msra.mxu0 0.0
        %871 = vmatprep.subr.mxu0 0.0
        %872 = vmatpush1.msra.mxu0 0.0
        %873 = vmatprep.subr.mxu0 0.0
        %874 = vmatpush1.msra.mxu0 0.0
        %875 = vmatprep.subr.mxu0 0.0
        %876 = vmatpush1.msra.mxu0 0.0
        %877 = vmatprep.subr.mxu0 0.0
        %878 = vmatpush1.msra.mxu0 0.0
        %879 = vmatprep.subr.mxu0 0.0
        %880 = vmatpush1.msra.mxu0 0.0
        %881 = vmatprep.subr.mxu0 0.0
        %882 = vmatpush1.msra.mxu0 %v852
        %883 = vmatprep.subr.mxu0 0.0
        %884 = vmatpush1.msra.mxu0 %v851
        %885 = vmatprep.subr.mxu0 0.0
        %886 = vmatpush1.msra.mxu0 %v850
        %887 = vmatprep.subr.mxu0 0.0
        %888 = vmatpush1.msra.mxu0 %v849
        %889 = vmatprep.subr.mxu0 0.0
        %890 = vmatpush1.msra.mxu0 %v848
        %891 = vmatprep.subr.mxu0 0.0
        %892 = vmatpush1.msra.mxu0 %v847
        %893 = vmatprep.subr.mxu0 0.0
        %894 = vmatpush1.msra.mxu0 %v846
        %895 = vmatprep.subr.mxu0 0.0
        %896 = vmatpush1.msra.mxu0 %v845
        %897 = vmatprep.subr.mxu0 0.0
        %898 = vmatpush2.msra.mxu0 0.0
        %899 = vmatprep.subr.mxu0 0.0
        %900 = vmatpush2.msra.mxu0 0.0
        %901 = vmatprep.subr.mxu0 0.0
        %902 = vmatpush2.msra.mxu0 0.0
        %903 = vmatprep.subr.mxu0 0.0
        %904 = vmatpush2.msra.mxu0 0.0
        %905 = vmatprep.subr.mxu0 0.0
        %906 = vmatpush2.msra.mxu0 0.0
        %907 = vmatprep.subr.mxu0 0.0
        %908 = vmatpush2.msra.mxu0 0.0
        %909 = vmatprep.subr.mxu0 0.0
        %910 = vmatpush2.msra.mxu0 0.0
        %911 = vmatprep.subr.mxu0 0.0
        %912 = vmatpush2.msra.mxu0 0.0
        %913 = vmatprep.subr.mxu0 0.0
        %914 = vmatpush2.msra.mxu0 0.0
        %915 = vmatprep.subr.mxu0 0.0
        %916 = vmatpush2.msra.mxu0 0.0
        %917 = vmatprep.subr.mxu0 0.0
        %918 = vmatpush2.msra.mxu0 0.0
        %919 = vmatprep.subr.mxu0 0.0
        %920 = vmatpush2.msra.mxu0 0.0
        %921 = vmatprep.subr.mxu0 0.0
        %922 = vmatpush2.msra.mxu0 0.0
        %923 = vmatprep.subr.mxu0 0.0
        %924 = vmatpush2.msra.mxu0 0.0
        %925 = vmatprep.subr.mxu0 0.0
        %926 = vmatpush2.msra.mxu0 0.0
        %927 = vmatprep.subr.mxu0 0.0
        %928 = vmatpush2.msra.mxu0 0.0
        %929 = vmatprep.mubr.f32.mxu0 0.0
        %930 = vmatmul.mubr.f32.gmra.mxu0 %v854
        %v931 = vpop.f32.mrf.mxu0
        %v932 = vadd.f32 0.0, %v931
        %v933 = vpop.f32.mrf.mxu0
        %934 = vmatprep.mubr.f32.mxu0 0.0
        %935 = vmatmul.mubr.f32.gmra.mxu0 %v857
        %v936 = vpop.f32.mrf.mxu0
        %v937 = vadd.f32 0.0, %v936
        %v938 = vpop.f32.mrf.mxu0
        %939 = vmatprep.mubr.f32.mxu0 0.0
        %940 = vmatmul.mubr.f32.gmra.mxu0 %v860
        %v941 = vpop.f32.mrf.mxu0
        %v942 = vadd.f32 0.0, %v941
        %v943 = vpop.f32.mrf.mxu0
        %944 = vmatprep.mubr.f32.mxu0 0.0
        %945 = vmatmul.mubr.f32.gmra.mxu0 %v863
        %v946 = vpop.f32.mrf.mxu0
        %v947 = vadd.f32 0.0, %v946
        %v948 = vpop.f32.mrf.mxu0
        %949 = vdwg.mxu0
        %v950 = vadd.f32 %v826, %v932
        %v951 = vadd.f32 %v831, %v937
        %v952 = vadd.f32 %v836, %v942
        %v953 = vadd.f32 %v841, %v947
        %v954 = vld [vmem:[%s4] sm:$0x1]
        %v956 = vlaneseq
        %v957 = vshrl.u32 %v956, 7
        %v958 = vsub.s32 0, %v957
        %v959 = vrot.slane %v954, %v958
        %v961 = vadd.f32 %v950, %v959
        %v962 = vadd.f32 %v951, %v959
        %v963 = vadd.f32 %v952, %v959
        %v964 = vadd.f32 %v953, %v959
        %v965 = vmax.f32 %v961, 0.0
        %v966 = vmax.f32 %v962, 0.0
        %v967 = vmax.f32 %v963, 0.0
        %v968 = vmax.f32 %v964, 0.0
        %969 = vmatprep.subr.mxu0 0.0
        %970 = vmatpush1.msra.mxu0 0.0
        %971 = vmatprep.subr.mxu0 0.0
        %972 = vmatpush1.msra.mxu0 0.0
        %973 = vmatprep.subr.mxu0 0.0
        %974 = vmatpush1.msra.mxu0 0.0
        %975 = vmatprep.subr.mxu0 0.0
        %976 = vmatpush1.msra.mxu0 0.0
        %977 = vmatprep.subr.mxu0 0.0
        %978 = vmatpush1.msra.mxu0 0.0
        %979 = vmatprep.subr.mxu0 0.0
        %980 = vmatpush1.msra.mxu0 0.0
        %981 = vmatprep.subr.mxu0 0.0
        %982 = vmatpush1.msra.mxu0 0.0
        %983 = vmatprep.subr.mxu0 0.0
        %984 = vmatpush1.msra.mxu0 0.0
        %985 = vmatprep.subr.mxu0 0.0
        %986 = vmatpush1.msra.mxu0 0.0
        %987 = vmatprep.subr.mxu0 0.0
        %988 = vmatpush1.msra.mxu0 0.0
        %989 = vmatprep.subr.mxu0 0.0
        %990 = vmatpush1.msra.mxu0 0.0
        %991 = vmatprep.subr.mxu0 0.0
        %992 = vmatpush1.msra.mxu0 0.0
        %993 = vmatprep.subr.mxu0 0.0
        %994 = vmatpush1.msra.mxu0 %v968
        %995 = vmatprep.subr.mxu0 0.0
        %996 = vmatpush1.msra.mxu0 %v967
        %997 = vmatprep.subr.mxu0 0.0
        %998 = vmatpush1.msra.mxu0 %v966
        %999 = vmatprep.subr.mxu0 0.0
        %1000 = vmatpush1.msra.mxu0 %v965
        %1001 = vmatprep.subr.mxu0 0.0
        %1002 = vmatpush2.msra.mxu0 0.0
        %1003 = vmatprep.subr.mxu0 0.0
        %1004 = vmatpush2.msra.mxu0 0.0
        %1005 = vmatprep.subr.mxu0 0.0
        %1006 = vmatpush2.msra.mxu0 0.0
        %1007 = vmatprep.subr.mxu0 0.0
        %1008 = vmatpush2.msra.mxu0 0.0
        %1009 = vmatprep.subr.mxu0 0.0
        %1010 = vmatpush2.msra.mxu0 0.0
        %1011 = vmatprep.subr.mxu0 0.0
        %1012 = vmatpush2.msra.mxu0 0.0
        %1013 = vmatprep.subr.mxu0 0.0
        %1014 = vmatpush2.msra.mxu0 0.0
        %1015 = vmatprep.subr.mxu0 0.0
        %1016 = vmatpush2.msra.mxu0 0.0
        %1017 = vmatprep.subr.mxu0 0.0
        %1018 = vmatpush2.msra.mxu0 0.0
        %1019 = vmatprep.subr.mxu0 0.0
        %1020 = vmatpush2.msra.mxu0 0.0
        %1021 = vmatprep.subr.mxu0 0.0
        %1022 = vmatpush2.msra.mxu0 0.0
        %1023 = vmatprep.subr.mxu0 0.0
        %1024 = vmatpush2.msra.mxu0 0.0
        %1025 = vmatprep.subr.mxu0 0.0
        %1026 = vmatpush2.msra.mxu0 0.0
        %1027 = vmatprep.subr.mxu0 0.0
        %1028 = vmatpush2.msra.mxu0 0.0
        %1029 = vmatprep.subr.mxu0 0.0
        %1030 = vmatpush2.msra.mxu0 0.0
        %1031 = vmatprep.subr.mxu0 0.0
        %1032 = vmatpush2.msra.mxu0 0.0
        %1033 = vmatprep.mubr.f32.mxu0 0.0
        %1034 = vmatmul.mubr.f32.gmra.mxu0 %v439
        %v1035 = vpop.f32.mrf.mxu0
        %v1036 = vadd.f32 0.0, %v1035
        %v1037 = vpop.f32.mrf.mxu0
        %1038 = vmatprep.mubr.f32.mxu0 0.0
        %1039 = vmatmul.mubr.f32.gmra.mxu0 %v442
        %v1040 = vpop.f32.mrf.mxu0
        %v1041 = vadd.f32 0.0, %v1040
        %v1042 = vpop.f32.mrf.mxu0
        %1043 = vmatprep.mubr.f32.mxu0 0.0
        %1044 = vmatmul.mubr.f32.gmra.mxu0 %v445
        %v1045 = vpop.f32.mrf.mxu0
        %v1046 = vadd.f32 0.0, %v1045
        %v1047 = vpop.f32.mrf.mxu0
        %1048 = vmatprep.mubr.f32.mxu0 0.0
        %1049 = vmatmul.mubr.f32.gmra.mxu0 %v448
        %v1050 = vpop.f32.mrf.mxu0
        %v1051 = vadd.f32 0.0, %v1050
        %v1052 = vpop.f32.mrf.mxu0
        %1053 = vdwg.mxu0
        %1054 = vmatprep.subr.mxu0 0.0
        %1055 = vmatpush1.msra.mxu0 0.0
        %1056 = vmatprep.subr.mxu0 0.0
        %1057 = vmatpush1.msra.mxu0 0.0
        %1058 = vmatprep.subr.mxu0 0.0
        %1059 = vmatpush1.msra.mxu0 0.0
        %1060 = vmatprep.subr.mxu0 0.0
        %1061 = vmatpush1.msra.mxu0 0.0
        %1062 = vmatprep.subr.mxu0 0.0
        %1063 = vmatpush1.msra.mxu0 0.0
        %1064 = vmatprep.subr.mxu0 0.0
        %1065 = vmatpush1.msra.mxu0 0.0
        %1066 = vmatprep.subr.mxu0 0.0
        %1067 = vmatpush1.msra.mxu0 0.0
        %1068 = vmatprep.subr.mxu0 0.0
        %1069 = vmatpush1.msra.mxu0 0.0
        %1070 = vmatprep.subr.mxu0 0.0
        %1071 = vmatpush1.msra.mxu0 0.0
        %1072 = vmatprep.subr.mxu0 0.0
        %1073 = vmatpush1.msra.mxu0 0.0
        %1074 = vmatprep.subr.mxu0 0.0
        %1075 = vmatpush1.msra.mxu0 0.0
        %1076 = vmatprep.subr.mxu0 0.0
        %1077 = vmatpush1.msra.mxu0 0.0
        %1078 = vmatprep.subr.mxu0 0.0
        %1079 = vmatpush1.msra.mxu0 %v968
        %1080 = vmatprep.subr.mxu0 0.0
        %1081 = vmatpush1.msra.mxu0 %v967
        %1082 = vmatprep.subr.mxu0 0.0
        %1083 = vmatpush1.msra.mxu0 %v966
        %1084 = vmatprep.subr.mxu0 0.0
        %1085 = vmatpush1.msra.mxu0 %v965
        %1086 = vmatprep.subr.mxu0 0.0
        %1087 = vmatpush2.msra.mxu0 0.0
        %1088 = vmatprep.subr.mxu0 0.0
        %1089 = vmatpush2.msra.mxu0 0.0
        %1090 = vmatprep.subr.mxu0 0.0
        %1091 = vmatpush2.msra.mxu0 0.0
        %1092 = vmatprep.subr.mxu0 0.0
        %1093 = vmatpush2.msra.mxu0 0.0
        %1094 = vmatprep.subr.mxu0 0.0
        %1095 = vmatpush2.msra.mxu0 0.0
        %1096 = vmatprep.subr.mxu0 0.0
        %1097 = vmatpush2.msra.mxu0 0.0
        %1098 = vmatprep.subr.mxu0 0.0
        %1099 = vmatpush2.msra.mxu0 0.0
        %1100 = vmatprep.subr.mxu0 0.0
        %1101 = vmatpush2.msra.mxu0 0.0
        %1102 = vmatprep.subr.mxu0 0.0
        %1103 = vmatpush2.msra.mxu0 0.0
        %1104 = vmatprep.subr.mxu0 0.0
        %1105 = vmatpush2.msra.mxu0 0.0
        %1106 = vmatprep.subr.mxu0 0.0
        %1107 = vmatpush2.msra.mxu0 0.0
        %1108 = vmatprep.subr.mxu0 0.0
        %1109 = vmatpush2.msra.mxu0 0.0
        %1110 = vmatprep.subr.mxu0 0.0
        %1111 = vmatpush2.msra.mxu0 0.0
        %1112 = vmatprep.subr.mxu0 0.0
        %1113 = vmatpush2.msra.mxu0 0.0
        %1114 = vmatprep.subr.mxu0 0.0
        %1115 = vmatpush2.msra.mxu0 0.0
        %1116 = vmatprep.subr.mxu0 0.0
        %1117 = vmatpush2.msra.mxu0 0.0
        %1118 = vmatprep.mubr.f32.mxu0 0.0
        %1119 = vmatmul.mubr.f32.gmra.mxu0 %v536
        %v1120 = vpop.f32.mrf.mxu0
        %v1121 = vadd.f32 0.0, %v1120
        %v1122 = vpop.f32.mrf.mxu0
        %1123 = vmatprep.mubr.f32.mxu0 0.0
        %1124 = vmatmul.mubr.f32.gmra.mxu0 %v539
        %v1125 = vpop.f32.mrf.mxu0
        %v1126 = vadd.f32 0.0, %v1125
        %v1127 = vpop.f32.mrf.mxu0
        %1128 = vmatprep.mubr.f32.mxu0 0.0
        %1129 = vmatmul.mubr.f32.gmra.mxu0 %v542
        %v1130 = vpop.f32.mrf.mxu0
        %v1131 = vadd.f32 0.0, %v1130
        %v1132 = vpop.f32.mrf.mxu0
        %1133 = vmatprep.mubr.f32.mxu0 0.0
        %1134 = vmatmul.mubr.f32.gmra.mxu0 %v545
        %v1135 = vpop.f32.mrf.mxu0
        %v1136 = vadd.f32 0.0, %v1135
        %v1137 = vpop.f32.mrf.mxu0
        %1138 = vdwg.mxu0
        %v1139 = vld [vmem:[#allocation7] sm:$0xff]
        %v1140 = vld [vmem:[#allocation7 + $0x8] sm:$0xff]
        %v1141 = vld [vmem:[#allocation7 + $0x10] sm:$0xff]
        %v1142 = vld [vmem:[#allocation7 + $0x18] sm:$0xff]
        %v1143 = vld [vmem:[#allocation7 + $0x20] sm:$0xff]
        %v1144 = vld [vmem:[#allocation7 + $0x28] sm:$0xff]
        %v1145 = vld [vmem:[#allocation7 + $0x30] sm:$0xff]
        %v1146 = vld [vmem:[#allocation7 + $0x38] sm:$0xff]
        %s1147 = scalar_lea.vmem [#allocation7], 64
        %v1148 = vld [vmem:[%s1147] sm:$0xff]
        %v1149 = vld [vmem:[%s1147 + $0x8] sm:$0xff]
        %v1150 = vld [vmem:[%s1147 + $0x10] sm:$0xff]
        %v1151 = vld [vmem:[%s1147 + $0x18] sm:$0xff]
        %v1152 = vld [vmem:[%s1147 + $0x20] sm:$0xff]
        %v1153 = vld [vmem:[%s1147 + $0x28] sm:$0xff]
        %v1154 = vld [vmem:[%s1147 + $0x30] sm:$0xff]
        %v1155 = vld [vmem:[%s1147 + $0x38] sm:$0xff]
        %v1157 = vsel %vm649, %v965, 0
        %v1160 = vsel %vm649, %v966, 0
        %v1163 = vsel %vm649, %v967, 0
        %v1166 = vsel %vm649, %v968, 0
        %1168 = vmatprep.subr.mxu0 0.0
        %1169 = vmatpush1.msra.mxu0 0.0
        %1170 = vmatprep.subr.mxu0 0.0
        %1171 = vmatpush1.msra.mxu0 0.0
        %1172 = vmatprep.subr.mxu0 0.0
        %1173 = vmatpush1.msra.mxu0 0.0
        %1174 = vmatprep.subr.mxu0 0.0
        %1175 = vmatpush1.msra.mxu0 0.0
        %1176 = vmatprep.subr.mxu0 0.0
        %1177 = vmatpush1.msra.mxu0 0.0
        %1178 = vmatprep.subr.mxu0 0.0
        %1179 = vmatpush1.msra.mxu0 0.0
        %1180 = vmatprep.subr.mxu0 0.0
        %1181 = vmatpush1.msra.mxu0 0.0
        %1182 = vmatprep.subr.mxu0 0.0
        %1183 = vmatpush1.msra.mxu0 0.0
        %1184 = vmatprep.subr.mxu0 0.0
        %1185 = vmatpush1.msra.mxu0 %v1155
        %1186 = vmatprep.subr.mxu0 0.0
        %1187 = vmatpush1.msra.mxu0 %v1154
        %1188 = vmatprep.subr.mxu0 0.0
        %1189 = vmatpush1.msra.mxu0 %v1153
        %1190 = vmatprep.subr.mxu0 0.0
        %1191 = vmatpush1.msra.mxu0 %v1152
        %1192 = vmatprep.subr.mxu0 0.0
        %1193 = vmatpush1.msra.mxu0 %v1151
        %1194 = vmatprep.subr.mxu0 0.0
        %1195 = vmatpush1.msra.mxu0 %v1150
        %1196 = vmatprep.subr.mxu0 0.0
        %1197 = vmatpush1.msra.mxu0 %v1149
        %1198 = vmatprep.subr.mxu0 0.0
        %1199 = vmatpush1.msra.mxu0 %v1148
        %1200 = vmatprep.subr.mxu0 0.0
        %1201 = vmatpush2.msra.mxu0 0.0
        %1202 = vmatprep.subr.mxu0 0.0
        %1203 = vmatpush2.msra.mxu0 0.0
        %1204 = vmatprep.subr.mxu0 0.0
        %1205 = vmatpush2.msra.mxu0 0.0
        %1206 = vmatprep.subr.mxu0 0.0
        %1207 = vmatpush2.msra.mxu0 0.0
        %1208 = vmatprep.subr.mxu0 0.0
        %1209 = vmatpush2.msra.mxu0 0.0
        %1210 = vmatprep.subr.mxu0 0.0
        %1211 = vmatpush2.msra.mxu0 0.0
        %1212 = vmatprep.subr.mxu0 0.0
        %1213 = vmatpush2.msra.mxu0 0.0
        %1214 = vmatprep.subr.mxu0 0.0
        %1215 = vmatpush2.msra.mxu0 0.0
        %1216 = vmatprep.subr.mxu0 0.0
        %1217 = vmatpush2.msra.mxu0 0.0
        %1218 = vmatprep.subr.mxu0 0.0
        %1219 = vmatpush2.msra.mxu0 0.0
        %1220 = vmatprep.subr.mxu0 0.0
        %1221 = vmatpush2.msra.mxu0 0.0
        %1222 = vmatprep.subr.mxu0 0.0
        %1223 = vmatpush2.msra.mxu0 0.0
        %1224 = vmatprep.subr.mxu0 0.0
        %1225 = vmatpush2.msra.mxu0 0.0
        %1226 = vmatprep.subr.mxu0 0.0
        %1227 = vmatpush2.msra.mxu0 0.0
        %1228 = vmatprep.subr.mxu0 0.0
        %1229 = vmatpush2.msra.mxu0 0.0
        %1230 = vmatprep.subr.mxu0 0.0
        %1231 = vmatpush2.msra.mxu0 0.0
        %1232 = vmatprep.mubr.f32.mxu0 0.0
        %1233 = vmatmul.mubr.f32.gmra.mxu0 %v1157
        %v1234 = vpop.f32.mrf.mxu0
        %v1235 = vadd.f32 0.0, %v1234
        %v1236 = vpop.f32.mrf.mxu0
        %1237 = vmatprep.mubr.f32.mxu0 0.0
        %1238 = vmatmul.mubr.f32.gmra.mxu0 %v1160
        %v1239 = vpop.f32.mrf.mxu0
        %v1240 = vadd.f32 0.0, %v1239
        %v1241 = vpop.f32.mrf.mxu0
        %1242 = vmatprep.mubr.f32.mxu0 0.0
        %1243 = vmatmul.mubr.f32.gmra.mxu0 %v1163
        %v1244 = vpop.f32.mrf.mxu0
        %v1245 = vadd.f32 0.0, %v1244
        %v1246 = vpop.f32.mrf.mxu0
        %1247 = vmatprep.mubr.f32.mxu0 0.0
        %1248 = vmatmul.mubr.f32.gmra.mxu0 %v1166
        %v1249 = vpop.f32.mrf.mxu0
        %v1250 = vadd.f32 0.0, %v1249
        %v1251 = vpop.f32.mrf.mxu0
        %1252 = vdwg.mxu0
        %v1254 = vsel %vm649, %v1036, 0
        %v1257 = vsel %vm649, %v1041, 0
        %v1260 = vsel %vm649, %v1046, 0
        %v1263 = vsel %vm649, %v1051, 0
        %1265 = vmatprep.subr.mxu0 0.0
        %1266 = vmatpush1.msra.mxu0 0.0
        %1267 = vmatprep.subr.mxu0 0.0
        %1268 = vmatpush1.msra.mxu0 0.0
        %1269 = vmatprep.subr.mxu0 0.0
        %1270 = vmatpush1.msra.mxu0 0.0
        %1271 = vmatprep.subr.mxu0 0.0
        %1272 = vmatpush1.msra.mxu0 0.0
        %1273 = vmatprep.subr.mxu0 0.0
        %1274 = vmatpush1.msra.mxu0 0.0
        %1275 = vmatprep.subr.mxu0 0.0
        %1276 = vmatpush1.msra.mxu0 0.0
        %1277 = vmatprep.subr.mxu0 0.0
        %1278 = vmatpush1.msra.mxu0 0.0
        %1279 = vmatprep.subr.mxu0 0.0
        %1280 = vmatpush1.msra.mxu0 0.0
        %1281 = vmatprep.subr.mxu0 0.0
        %1282 = vmatpush1.msra.mxu0 %v1146
        %1283 = vmatprep.subr.mxu0 0.0
        %1284 = vmatpush1.msra.mxu0 %v1145
        %1285 = vmatprep.subr.mxu0 0.0
        %1286 = vmatpush1.msra.mxu0 %v1144
        %1287 = vmatprep.subr.mxu0 0.0
        %1288 = vmatpush1.msra.mxu0 %v1143
        %1289 = vmatprep.subr.mxu0 0.0
        %1290 = vmatpush1.msra.mxu0 %v1142
        %1291 = vmatprep.subr.mxu0 0.0
        %1292 = vmatpush1.msra.mxu0 %v1141
        %1293 = vmatprep.subr.mxu0 0.0
        %1294 = vmatpush1.msra.mxu0 %v1140
        %1295 = vmatprep.subr.mxu0 0.0
        %1296 = vmatpush1.msra.mxu0 %v1139
        %1297 = vmatprep.subr.mxu0 0.0
        %1298 = vmatpush2.msra.mxu0 0.0
        %1299 = vmatprep.subr.mxu0 0.0
        %1300 = vmatpush2.msra.mxu0 0.0
        %1301 = vmatprep.subr.mxu0 0.0
        %1302 = vmatpush2.msra.mxu0 0.0
        %1303 = vmatprep.subr.mxu0 0.0
        %1304 = vmatpush2.msra.mxu0 0.0
        %1305 = vmatprep.subr.mxu0 0.0
        %1306 = vmatpush2.msra.mxu0 0.0
        %1307 = vmatprep.subr.mxu0 0.0
        %1308 = vmatpush2.msra.mxu0 0.0
        %1309 = vmatprep.subr.mxu0 0.0
        %1310 = vmatpush2.msra.mxu0 0.0
        %1311 = vmatprep.subr.mxu0 0.0
        %1312 = vmatpush2.msra.mxu0 0.0
        %1313 = vmatprep.subr.mxu0 0.0
        %1314 = vmatpush2.msra.mxu0 0.0
        %1315 = vmatprep.subr.mxu0 0.0
        %1316 = vmatpush2.msra.mxu0 0.0
        %1317 = vmatprep.subr.mxu0 0.0
        %1318 = vmatpush2.msra.mxu0 0.0
        %1319 = vmatprep.subr.mxu0 0.0
        %1320 = vmatpush2.msra.mxu0 0.0
        %1321 = vmatprep.subr.mxu0 0.0
        %1322 = vmatpush2.msra.mxu0 0.0
        %1323 = vmatprep.subr.mxu0 0.0
        %1324 = vmatpush2.msra.mxu0 0.0
        %1325 = vmatprep.subr.mxu0 0.0
        %1326 = vmatpush2.msra.mxu0 0.0
        %1327 = vmatprep.subr.mxu0 0.0
        %1328 = vmatpush2.msra.mxu0 0.0
        %1329 = vmatprep.mubr.f32.mxu0 0.0
        %1330 = vmatmul.mubr.f32.gmra.mxu0 %v1254
        %v1331 = vpop.f32.mrf.mxu0
        %v1332 = vadd.f32 %v1235, %v1331
        %v1333 = vpop.f32.mrf.mxu0
        %1334 = vmatprep.mubr.f32.mxu0 0.0
        %1335 = vmatmul.mubr.f32.gmra.mxu0 %v1257
        %v1336 = vpop.f32.mrf.mxu0
        %v1337 = vadd.f32 %v1240, %v1336
        %v1338 = vpop.f32.mrf.mxu0
        %1339 = vmatprep.mubr.f32.mxu0 0.0
        %1340 = vmatmul.mubr.f32.gmra.mxu0 %v1260
        %v1341 = vpop.f32.mrf.mxu0
        %v1342 = vadd.f32 %v1245, %v1341
        %v1343 = vpop.f32.mrf.mxu0
        %1344 = vmatprep.mubr.f32.mxu0 0.0
        %1345 = vmatmul.mubr.f32.gmra.mxu0 %v1263
        %v1346 = vpop.f32.mrf.mxu0
        %v1347 = vadd.f32 %v1250, %v1346
        %v1348 = vpop.f32.mrf.mxu0
        %1349 = vdwg.mxu0
        %s1350 = scalar_lea.vmem [#allocation7], 128
        %v1351 = vld [vmem:[%s1350] sm:$0xff]
        %v1352 = vld [vmem:[%s1350 + $0x8] sm:$0xff]
        %v1353 = vld [vmem:[%s1350 + $0x10] sm:$0xff]
        %v1354 = vld [vmem:[%s1350 + $0x18] sm:$0xff]
        %v1355 = vld [vmem:[%s1350 + $0x20] sm:$0xff]
        %v1356 = vld [vmem:[%s1350 + $0x28] sm:$0xff]
        %v1357 = vld [vmem:[%s1350 + $0x30] sm:$0xff]
        %v1358 = vld [vmem:[%s1350 + $0x38] sm:$0xff]
        %v1360 = vsel %vm649, %v1121, 0
        %v1363 = vsel %vm649, %v1126, 0
        %v1366 = vsel %vm649, %v1131, 0
        %v1369 = vsel %vm649, %v1136, 0
        %1371 = vmatprep.subr.mxu0 0.0
        %1372 = vmatpush1.msra.mxu0 0.0
        %1373 = vmatprep.subr.mxu0 0.0
        %1374 = vmatpush1.msra.mxu0 0.0
        %1375 = vmatprep.subr.mxu0 0.0
        %1376 = vmatpush1.msra.mxu0 0.0
        %1377 = vmatprep.subr.mxu0 0.0
        %1378 = vmatpush1.msra.mxu0 0.0
        %1379 = vmatprep.subr.mxu0 0.0
        %1380 = vmatpush1.msra.mxu0 0.0
        %1381 = vmatprep.subr.mxu0 0.0
        %1382 = vmatpush1.msra.mxu0 0.0
        %1383 = vmatprep.subr.mxu0 0.0
        %1384 = vmatpush1.msra.mxu0 0.0
        %1385 = vmatprep.subr.mxu0 0.0
        %1386 = vmatpush1.msra.mxu0 0.0
        %1387 = vmatprep.subr.mxu0 0.0
        %1388 = vmatpush1.msra.mxu0 %v1358
        %1389 = vmatprep.subr.mxu0 0.0
        %1390 = vmatpush1.msra.mxu0 %v1357
        %1391 = vmatprep.subr.mxu0 0.0
        %1392 = vmatpush1.msra.mxu0 %v1356
        %1393 = vmatprep.subr.mxu0 0.0
        %1394 = vmatpush1.msra.mxu0 %v1355
        %1395 = vmatprep.subr.mxu0 0.0
        %1396 = vmatpush1.msra.mxu0 %v1354
        %1397 = vmatprep.subr.mxu0 0.0
        %1398 = vmatpush1.msra.mxu0 %v1353
        %1399 = vmatprep.subr.mxu0 0.0
        %1400 = vmatpush1.msra.mxu0 %v1352
        %1401 = vmatprep.subr.mxu0 0.0
        %1402 = vmatpush1.msra.mxu0 %v1351
        %1403 = vmatprep.subr.mxu0 0.0
        %1404 = vmatpush2.msra.mxu0 0.0
        %1405 = vmatprep.subr.mxu0 0.0
        %1406 = vmatpush2.msra.mxu0 0.0
        %1407 = vmatprep.subr.mxu0 0.0
        %1408 = vmatpush2.msra.mxu0 0.0
        %1409 = vmatprep.subr.mxu0 0.0
        %1410 = vmatpush2.msra.mxu0 0.0
        %1411 = vmatprep.subr.mxu0 0.0
        %1412 = vmatpush2.msra.mxu0 0.0
        %1413 = vmatprep.subr.mxu0 0.0
        %1414 = vmatpush2.msra.mxu0 0.0
        %1415 = vmatprep.subr.mxu0 0.0
        %1416 = vmatpush2.msra.mxu0 0.0
        %1417 = vmatprep.subr.mxu0 0.0
        %1418 = vmatpush2.msra.mxu0 0.0
        %1419 = vmatprep.subr.mxu0 0.0
        %1420 = vmatpush2.msra.mxu0 0.0
        %1421 = vmatprep.subr.mxu0 0.0
        %1422 = vmatpush2.msra.mxu0 0.0
        %1423 = vmatprep.subr.mxu0 0.0
        %1424 = vmatpush2.msra.mxu0 0.0
        %1425 = vmatprep.subr.mxu0 0.0
        %1426 = vmatpush2.msra.mxu0 0.0
        %1427 = vmatprep.subr.mxu0 0.0
        %1428 = vmatpush2.msra.mxu0 0.0
        %1429 = vmatprep.subr.mxu0 0.0
        %1430 = vmatpush2.msra.mxu0 0.0
        %1431 = vmatprep.subr.mxu0 0.0
        %1432 = vmatpush2.msra.mxu0 0.0
        %1433 = vmatprep.subr.mxu0 0.0
        %1434 = vmatpush2.msra.mxu0 0.0
        %1435 = vmatprep.mubr.f32.mxu0 0.0
        %1436 = vmatmul.mubr.f32.gmra.mxu0 %v1360
        %v1437 = vpop.f32.mrf.mxu0
        %v1438 = vadd.f32 0.0, %v1437
        %v1439 = vpop.f32.mrf.mxu0
        %1440 = vmatprep.mubr.f32.mxu0 0.0
        %1441 = vmatmul.mubr.f32.gmra.mxu0 %v1363
        %v1442 = vpop.f32.mrf.mxu0
        %v1443 = vadd.f32 0.0, %v1442
        %v1444 = vpop.f32.mrf.mxu0
        %1445 = vmatprep.mubr.f32.mxu0 0.0
        %1446 = vmatmul.mubr.f32.gmra.mxu0 %v1366
        %v1447 = vpop.f32.mrf.mxu0
        %v1448 = vadd.f32 0.0, %v1447
        %v1449 = vpop.f32.mrf.mxu0
        %1450 = vmatprep.mubr.f32.mxu0 0.0
        %1451 = vmatmul.mubr.f32.gmra.mxu0 %v1369
        %v1452 = vpop.f32.mrf.mxu0
        %v1453 = vadd.f32 0.0, %v1452
        %v1454 = vpop.f32.mrf.mxu0
        %1455 = vdwg.mxu0
        %v1456 = vadd.f32 %v1332, %v1438
        %v1457 = vadd.f32 %v1337, %v1443
        %v1458 = vadd.f32 %v1342, %v1448
        %v1459 = vadd.f32 %v1347, %v1453
        %v1460 = vld [vmem:[%s6] sm:$0x1]
        %v1462 = vlaneseq
        %v1463 = vshrl.u32 %v1462, 7
        %v1464 = vsub.s32 0, %v1463
        %v1465 = vrot.slane %v1460, %v1464
        %v1467 = vadd.f32 %v1456, %v1465
        %v1468 = vadd.f32 %v1457, %v1465
        %v1469 = vadd.f32 %v1458, %v1465
        %v1470 = vadd.f32 %v1459, %v1465
        %v1471 = vmax.f32 %v1467, 0.0
        %v1472 = vmax.f32 %v1468, 0.0
        %v1473 = vmax.f32 %v1469, 0.0
        %v1474 = vmax.f32 %v1470, 0.0
        %1475 = vst.msk [vmem:[%s316] sm:$0xff] %vm649, %v1471
        %1476 = vst.msk [vmem:[%s316 + $0x8] sm:$0xff] %vm649, %v1472
        %1479 = vrot.lane.b32.xlu0 %v1473, 64
        %v1480 = vpop.permute.xlu0 %1479
        %1481 = vrot.lane.b32.xlu0 %v1474, 64
        %v1482 = vpop.permute.xlu0 %1481
        %vm1485 = vcmask 1048064
        %1486 = vst.msk [vmem:[%s316] sm:$0xff] %vm1485, %v1480
        %1487 = vst.msk [vmem:[%s316 + $0x8] sm:$0xff] %vm1485, %v1482
        %s1488 = sand.u32 %s183, 1
        %s1489 = scalar_lea.sflag [#allocation4], %s1488
        %s1490 = sand.u32 %s183, 1
        %s1491 = smul.addr %s1490, 16
        %s1492 = scalar_lea.vmem [#allocation8], %s1491
        // Predicated region
        $region61: #{tpu_custom_call.1} parent=47 // pred_check
          %p1493 = pneg %p193
        $region62: #{tpu_custom_call.1} parent=47 // pred_check_branch
          %1495 = sbr.rel (%p1493) target = $region64
        $region63: #{tpu_custom_call.1} parent=47 // pred_region
          %s1496 = smul.u32 2, %s23
          %s1498 = ssub.s32 256, 256
          %1499 = vsyncadd %s1489, %s1498
          %s1500 = smul.addr %s1496, 128
          %s1501 = scalar_lea.hbm %s7, %s1500
          %s1502 = sshll.u32 %s1492, 4
          %s1503 = int_to_ptr.vmem [resolvable:$true] %s1502
          %1508 = dma.vmem_to_hbm [thread:$0]  %s1503, 256, %s1501, %s1489, 128, 128, 8
        $region64: #{tpu_custom_call.1} parent=47 // pred_fallthru
          _
      $region48: #{tpu_custom_call.1} parent=5 // pred_fallthru
        _
      %p1509 = scmp.le.s32.totalorder 2, %s18
      // Predicated region
      $region65: #{tpu_custom_call.1} parent=5 // pred_check
        %p1510 = pneg %p1509
      $region66: #{tpu_custom_call.1} parent=5 // pred_check_branch
        %1512 = sbr.rel (%p1510) target = $region68
      $region67: #{tpu_custom_call.1} parent=5 // pred_region
        %s1513 = ssub.s32 %s18, 2
        // Predicated region
        $region69: #{tpu_custom_call.1} parent=67 // pred_check
          %p1514 = pneg %p199
        $region70: #{tpu_custom_call.1} parent=67 // pred_check_branch
          %1516 = sbr.rel (%p1514) target = $region72
        $region71: #{tpu_custom_call.1} parent=67 // pred_region
          %s1517 = sand.u32 %s184, 1
          %s1518 = scalar_lea.sflag [#allocation4], %s1517
          %s1519 = sand.u32 %s184, 1
          %s1520 = smul.addr %s1519, 16
          %s1521 = scalar_lea.vmem [#allocation8], %s1520
          %1522 = dma.done %s1518, 256
        $region72: #{tpu_custom_call.1} parent=67 // pred_fallthru
          _
      $region68: #{tpu_custom_call.1} parent=5 // pred_fallthru
        _
    $region6: #{tpu_custom_call.1} parent=1 // loop_footer
      %s22 = sadd.s32 1, %s18
    $region7: #{tpu_custom_call.1} parent=1 // loop_footer_branch
      %17 = sbr.rel target = $region3
    $region8: #{tpu_custom_call.1} parent=1 // loop_exit
      _
    %1523 = vsyncpa [#allocation3], 1
    %s1524 = scalar_lea.sflag [#allocation3], 1
    %1525 = vsyncpa %s1524, 1
    %1526 = vsyncpa [#allocation6], 1
    %1527 = vsyncpa [#allocation4], 1
    %s1528 = scalar_lea.sflag [#allocation4], 1
    %1529 = vsyncpa %s1528, 1

</llo_original>
